<compile_context>
chip_gen: v7x
topology: tpu7x:2x2x1
jax: 0.10.0
libtpu: 0.0.40
codegen_flags: <defaults>
</compile_context>

<pallas_src>
import functools

import jax
import jax.numpy as jnp
from jax.experimental import pallas as pl
from jax.experimental.pallas import tpu as pltpu

_LANES = 128
_ROW_ALIGN = 16          # bf16 sublane pack -> keep every row-tile 16-aligned
_STATS_ROWS = 8
_LRELU_SLOPE = 0.2
_BN_EPS = 1e-5


def _round_up(x, m):
    return ((x + m - 1) // m) * m


# --------------------------------------------------------------------------
# Kernels
# --------------------------------------------------------------------------
def _conv_stats_kernel(p_ref, w_ref, stats_ref):
    """Recompute variant, phase 1: GEMM + per-tile BN partials, no y writeback."""
    y = jnp.dot(p_ref[...], w_ref[...], preferred_element_type=jnp.float32)
    s = jnp.sum(y, axis=0, keepdims=True)
    ss = jnp.sum(y * y, axis=0, keepdims=True)
    stats_ref[...] = jnp.concatenate(
        [s, ss, jnp.zeros((_STATS_ROWS - 2, y.shape[1]), jnp.float32)], axis=0)


def _conv_stats_y_kernel(p_ref, w_ref, y_ref, stats_ref):
    """Two-phase variant, phase 1: GEMM + BN partials + bf16 y writeback."""
    y = jnp.dot(p_ref[...], w_ref[...], preferred_element_type=jnp.float32)
    s = jnp.sum(y, axis=0, keepdims=True)          # stats in f32, before the cast
    ss = jnp.sum(y * y, axis=0, keepdims=True)
    stats_ref[...] = jnp.concatenate(
        [s, ss, jnp.zeros((_STATS_ROWS - 2, y.shape[1]), jnp.float32)], axis=0)
    y_ref[...] = y.astype(y_ref.dtype)             # bf16: half the intermediate HBM


def _conv_bn_lrelu_kernel(p_ref, w_ref, a_ref, c_ref, o_ref):
    """Recompute variant, phase 2: redo the GEMM, then fused BN affine + LReLU."""
    y = jnp.dot(p_ref[...], w_ref[...], preferred_element_type=jnp.float32)
    z = y * a_ref[...] + c_ref[...]
    o_ref[...] = jnp.where(z >= 0, z, _LRELU_SLOPE * z)


def _bn_lrelu_kernel(y_ref, a_ref, c_ref, o_ref):
    """Two-phase variant, phase 2: bf16 y -> BN affine + LReLU."""
    z = y_ref[...].astype(jnp.float32) * a_ref[...] + c_ref[...]
    o_ref[...] = jnp.where(z >= 0, z, _LRELU_SLOPE * z)


# --------------------------------------------------------------------------
# Wrapper helpers
# --------------------------------------------------------------------------
def _spectral_sigma(w_mat, n_iter=50):
    """Largest singular value via deterministic (fixed init) power iteration."""
    v = jax.random.normal(jax.random.PRNGKey(0), (w_mat.shape[1],), jnp.float32)
    v = v / (jnp.linalg.norm(v) + 1e-12)

    def body(_, v):
        u = w_mat @ v
        u = u / (jnp.linalg.norm(u) + 1e-12)
        v = w_mat.T @ u
        v = v / (jnp.linalg.norm(v) + 1e-12)
        return v

    v = jax.lax.fori_loop(0, n_iter, body, v)
    return jnp.linalg.norm(w_mat @ v)


def _plan_tiles(rows, requested, k_pad, c_pad):
    """Pick the row-tile size.

    Both phases are HBM-bound, so tiles should be as large as possible
    (amortize the ~0.35us fixed per-grid-step overhead), but:
      * capped by a double-buffered VMEM working-set budget (20 MiB) that is
        safe for v7x's 64 MiB physical VMEM with headroom (128 MiB on v5e/v6e);
      * on large problems, keep >= 8 grid steps so both v7x TensorCores stay
        busy under the "parallel" grid axis.
    Also returns an explicit vmem_limit_bytes derived from the working set.
    """
    rows_a = _round_up(rows, _ROW_ALIGN)
    t = max(_ROW_ALIGN, min(_round_up(requested, _ROW_ALIGN), rows_a))

    # Conservative per-row bytes over both phases/variants (double-buffered):
    #   patches bf16 in (2*K) + y bf16 (2*C) + output f32 (4*C)
    per_row = 2 * (2 * k_pad + 2 * c_pad + 4 * c_pad)
    # folded bf16 weight (both buffers) + stats / scale / shift tiles
    fixed = 2 * (2 * k_pad * c_pad) + 32 * 4 * c_pad
    budget = 20 * 1024 * 1024
    t_cap = max(_ROW_ALIGN,
                ((budget - fixed) // per_row) // _ROW_ALIGN * _ROW_ALIGN)
    t = min(t, t_cap)

    # Megacore load balance (v7x): keep >= 8 steps when the problem is big
    # enough that the resulting tiles are still comfortably large.
    if rows_a // t < 8 and rows_a >= 8 * 512:
        t = _round_up(-(-rows_a // 8), _ROW_ALIGN)

    rows_pad = _round_up(rows, t)
    num_tiles = rows_pad // t
    ws = fixed + t * per_row
    vmem_limit = int(min(max(2 * ws, 32 * 1024 * 1024), 48 * 1024 * 1024))
    return t, rows_pad, num_tiles, vmem_limit


# --------------------------------------------------------------------------
# Forward (NHWC core + NCHW wrapper matching the PyTorch module)
# --------------------------------------------------------------------------
@functools.partial(jax.jit, static_argnames=("tile_rows",))
def conv2d_relu_forward_nhwc(x_nhwc, weight, bias, gamma, beta, tile_rows=1024):
    """Conv2dReLU forward (batch_norm=True path), NHWC in / NHWC out.

    x_nhwc : (N, H, W, Cin) f32
    weight : (Cout, Cin, 3, 3) f32 (pre-spectral-norm conv weight)
    bias, gamma, beta : (Cout,) f32
    """
    # Conv bias cancels exactly under BatchNorm's batch statistics, so it is
    # accepted for API parity but never applied (also removes the padded-row
    # bias correction of the previous version).
    del bias

    N, H, W, Cin = x_nhwc.shape
    Cout = weight.shape[0]
    K = 9 * Cin
    # K is the GEMM contraction dim; its blocks cover the full array extent, so
    # the 128-lane divisibility rule is satisfied by "equals full dim" and a
    # 16-multiple pad (bf16 sublane pack) suffices -> no 2.7x patch blow-up.
    K_pad = _round_up(K, 16)
    C_pad = _round_up(Cout, _LANES)
    rows = N * H * W

    tile_r, rows_pad, num_tiles, vmem_limit = _plan_tiles(rows, tile_rows, K_pad, C_pad)
    # Recompute the cheap GEMM in phase 2 instead of storing y whenever the
    # extra patch re-read (2*K_pad B/row) is cheaper than the bf16 y
    # write + read (4*C_pad B/row).  Shape-static -> resolved at trace time.
    use_recompute = 2 * K_pad <= 4 * C_pad

    # --- parameter glue: spectral norm + tap folding + lane padding ---
    sigma = _spectral_sigma(weight.reshape(Cout, -1).astype(jnp.float32))
    w_sn = weight.astype(jnp.float32) / sigma                    # (Cout,Cin,3,3)
    w_mat = jnp.transpose(w_sn, (2, 3, 1, 0)).reshape(K, Cout)   # (9*Cin, Cout)
    w_mat = jnp.pad(w_mat, ((0, K_pad - K), (0, C_pad - Cout))).astype(jnp.bfloat16)
    gamma_p = jnp.pad(gamma.astype(jnp.float32), (0, C_pad - Cout))
    beta_p = jnp.pad(beta.astype(jnp.float32), (0, C_pad - Cout))

    # --- im2col: reflect pad, 9 shifted slices folded into the lane axis ---
    xp = jnp.pad(x_nhwc, ((0, 0), (1, 1), (1, 1), (0, 0)), mode="reflect")
    patches = jnp.concatenate(
        [xp[:, kh:kh + H, kw:kw + W, :] for kh in range(3) for kw in range(3)],
        axis=-1,
    ).reshape(rows, K)
    patches = jnp.pad(patches, ((0, rows_pad - rows), (0, K_pad - K)))
    patches = patches.astype(jnp.bfloat16)                       # bf16 MXU operand

    cp = pltpu.CompilerParams(dimension_semantics=("parallel",),
                              vmem_limit_bytes=vmem_limit)

    patch_spec = pl.BlockSpec((tile_r, K_pad), lambda i: (i, 0))
    weight_spec = pl.BlockSpec((K_pad, C_pad), lambda i: (0, 0))
    vec_spec = pl.BlockSpec((1, C_pad), lambda i: (0, 0))
    stats_spec = pl.BlockSpec((_STATS_ROWS, C_pad), lambda i: (i, 0))
    out_spec = pl.BlockSpec((tile_r, C_pad), lambda i: (i, 0))

    # --- phase 1: conv GEMM + per-tile BN partials (optionally bf16 y) ---
    if use_recompute:
        stats = pl.pallas_call(
            _conv_stats_kernel,
            out_shape=jax.ShapeDtypeStruct((num_tiles * _STATS_ROWS, C_pad),
                                           jnp.float32),
            grid_spec=pltpu.PrefetchScalarGridSpec(
                num_scalar_prefetch=0,
                grid=(num_tiles,),
                in_specs=[patch_spec, weight_spec],
                out_specs=stats_spec,
            ),
            compiler_params=cp,
        )(patches, w_mat)
        y_bf16 = None
    else:
        y_bf16, stats = pl.pallas_call(
            _conv_stats_y_kernel,
            out_shape=(
                jax.ShapeDtypeStruct((rows_pad, C_pad), jnp.bfloat16),
                jax.ShapeDtypeStruct((num_tiles * _STATS_ROWS, C_pad), jnp.float32),
            ),
            grid_spec=pltpu.PrefetchScalarGridSpec(
                num_scalar_prefetch=0,
                grid=(num_tiles,),
                in_specs=[patch_spec, weight_spec],
                out_specs=(out_spec, stats_spec),
            ),
            compiler_params=cp,
        )(patches, w_mat)

    # --- tiny per-channel reduction + BN scale/shift folding (plain JAX) ---
    # Zero-padded patch rows contribute exactly 0 (no bias inside the kernel),
    # so no correction is needed.
    stats = stats.reshape(num_tiles, _STATS_ROWS, C_pad)
    s_tot = jnp.sum(stats[:, 0, :], axis=0)
    ss_tot = jnp.sum(stats[:, 1, :], axis=0)
    cnt = jnp.float32(rows)
    mean0 = s_tot / cnt
    var = jnp.maximum(ss_tot / cnt - mean0 * mean0, 0.0)   # biased var (BN training)
    rstd = jax.lax.rsqrt(var + _BN_EPS)
    a = (gamma_p * rstd).reshape(1, C_pad)
    c = (beta_p - mean0 * gamma_p * rstd).reshape(1, C_pad)

    # --- phase 2: BN affine + LeakyReLU(0.2) (re-GEMM or bf16-y read) ---
    if use_recompute:
        out_flat = pl.pallas_call(
            _conv_bn_lrelu_kernel,
            out_shape=jax.ShapeDtypeStruct((rows_pad, C_pad), jnp.float32),
            grid_spec=pltpu.PrefetchScalarGridSpec(
                num_scalar_prefetch=0,
                grid=(num_tiles,),
                in_specs=[patch_spec, weight_spec, vec_spec, vec_spec],
                out_specs=out_spec,
            ),
            compiler_params=cp,
        )(patches, w_mat, a, c)
    else:
        y_spec = pl.BlockSpec((tile_r, C_pad), lambda i: (i, 0))
        out_flat = pl.pallas_call(
            _bn_lrelu_kernel,
            out_shape=jax.ShapeDtypeStruct((rows_pad, C_pad), jnp.float32),
            grid_spec=pltpu.PrefetchScalarGridSpec(
                num_scalar_prefetch=0,
                grid=(num_tiles,),
                in_specs=[y_spec, vec_spec, vec_spec],
                out_specs=out_spec,
            ),
            compiler_params=cp,
        )(y_bf16, a, c)

    # Identity slice (zero cost) when Cout % 128 == 0 and rows % tile == 0.
    return out_flat[:rows, :Cout].reshape(N, H, W, Cout)


@functools.partial(jax.jit, static_argnames=("tile_rows",))
def conv2d_relu_forward(x_nchw, weight, bias, gamma, beta, tile_rows=1024):
    """NCHW in / NCHW out wrapper matching the PyTorch module. NHWC callers
    should use conv2d_relu_forward_nhwc directly and skip both transposes."""
    x_nhwc = jnp.transpose(x_nchw, (0, 2, 3, 1))
    out_nhwc = conv2d_relu_forward_nhwc(x_nhwc, weight, bias, gamma, beta,
                                        tile_rows=tile_rows)
    return jnp.transpose(out_nhwc, (0, 3, 1, 2))


# --------------------------------------------------------------------------
# Pure-JAX f32 reference mirroring the PyTorch forward
# --------------------------------------------------------------------------
def _reference_forward(x_nchw, weight, bias, gamma, beta):
    Cout = weight.shape[0]
    sigma = _spectral_sigma(weight.reshape(Cout, -1).astype(jnp.float32))
    w_sn = weight / sigma
    xp = jnp.pad(x_nchw, ((0, 0), (0, 0), (1, 1), (1, 1)), mode="reflect")
    y = jax.lax.conv_general_dilated(
        xp, w_sn, window_strides=(1, 1), padding="VALID",
        dimension_numbers=("NCHW", "OIHW", "NCHW"))
    y = y + bias[None, :, None, None]
    mean = y.mean(axis=(0, 2, 3), keepdims=True)
    var = y.var(axis=(0, 2, 3), keepdims=True)        # biased, as in BN training
    yh = (y - mean) / jnp.sqrt(var + _BN_EPS)
    z = gamma[None, :, None, None] * yh + beta[None, :, None, None]
    return jnp.where(z >= 0, z, _LRELU_SLOPE * z)


if __name__ == "__main__":
    def _run_case(seed, N, Cin, Cout, H, W):
        key = jax.random.PRNGKey(seed)
        kx, kw, kb, kg, kbe = jax.random.split(key, 5)
        x = jax.random.normal(kx, (N, Cin, H, W), jnp.float32)
        weight = 0.1 * jax.random.normal(kw, (Cout, Cin, 3, 3), jnp.float32)
        bias = 0.1 * jax.random.normal(kb, (Cout,), jnp.float32)
        gamma = 1.0 + 0.1 * jax.random.normal(kg, (Cout,), jnp.float32)
        beta = 0.1 * jax.random.normal(kbe, (Cout,), jnp.float32)

        out = jax.block_until_ready(
            conv2d_relu_forward(x, weight, bias, gamma, beta))
        ref = jax.block_until_ready(
            _reference_forward(x, weight, bias, gamma, beta))
        assert out.shape == (N, Cout, H, W)
        # bf16 GEMM operands (f32 accumulation) vs pure-f32 reference: allow
        # bf16 rounding noise amplified by the BN normalization.
        max_err = float(jnp.max(jnp.abs(out - ref)))
        assert max_err < 5e-2, f"mismatch vs reference ({N},{Cin},{Cout}): {max_err}"

    # Primary small shape from the module spec (exercises the recompute path).
    _run_case(0, N=2, Cin=4, Cout=8, H=16, W=16)
    # Larger-Cin shape (exercises the bf16-intermediate two-phase path).
    _run_case(1, N=2, Cin=40, Cout=8, H=16, W=16)

    print("KERNEL_OK")
</pallas_src>

<mosaic_0001>
module attributes {stable_mosaic.version = 11 : i64} {
  func.func @_conv_stats_kernel(%arg0: i32, %arg1: memref<512x48xbf16, #tpu.memory_space<vmem>>, %arg2: memref<48x128xbf16, #tpu.memory_space<vmem>>, %arg3: memref<8x128xf32, #tpu.memory_space<vmem>>) attributes {dimension_semantics = [#tpu.dimension_semantics<parallel>], iteration_bounds = array<i64: 1>, scalar_prefetch = 0 : i64, scratch_operands = 0 : i64, tpu.core_type = #tpu.core_type<tc>, window_params = [{transform_indices = @transform_0, window_bounds = array<i64: 512, 48>}, {pipeline_mode = #tpu.pipeline_mode<synchronous>, transform_indices = @transform_1, window_bounds = array<i64: 48, 128>}, {transform_indices = @transform_2, window_bounds = array<i64: 8, 128>}]} {
    %c0 = arith.constant 0 : index
    %c0_0 = arith.constant 0 : index
    %0 = vector.load %arg1[%c0, %c0_0] : memref<512x48xbf16, #tpu.memory_space<vmem>>, vector<512x48xbf16>
    %c0_1 = arith.constant 0 : index
    %c0_2 = arith.constant 0 : index
    %1 = vector.load %arg2[%c0_1, %c0_2] : memref<48x128xbf16, #tpu.memory_space<vmem>>, vector<48x128xbf16>
    %cst = arith.constant dense<0.000000e+00> : vector<512x128xf32>
    %2 = tpu.matmul %0, %1, %cst {dimension_numbers = #tpu.dot_dimension_numbers<[1], [0], [0], [1], [0, 0, 1, 1], [], []>} : vector<512x48xbf16>, vector<48x128xbf16>, vector<512x128xf32> -> vector<512x128xf32>
    %cst_3 = arith.constant dense<0.000000e+00> : vector<128xf32>
    %3 = vector.multi_reduction <add>, %2, %cst_3 [0] : vector<512x128xf32> to vector<128xf32>
    %4 = vector.shape_cast %3 : vector<128xf32> to vector<1x128xf32>
    %5 = arith.mulf %2, %2 : vector<512x128xf32>
    %cst_4 = arith.constant dense<0.000000e+00> : vector<128xf32>
    %6 = vector.multi_reduction <add>, %5, %cst_4 [0] : vector<512x128xf32> to vector<128xf32>
    %7 = vector.shape_cast %6 : vector<128xf32> to vector<1x128xf32>
    %cst_5 = arith.constant 0.000000e+00 : f32
    %8 = vector.broadcast %cst_5 : f32 to vector<6x128xf32>
    %9 = tpu.concatenate %4, %7, %8 in 0 : vector<1x128xf32>, vector<1x128xf32>, vector<6x128xf32> -> vector<8x128xf32>
    %c0_6 = arith.constant 0 : index
    %c0_7 = arith.constant 0 : index
    %10 = vector.load %arg3[%c0_6, %c0_7] : memref<8x128xf32, #tpu.memory_space<vmem>>, vector<8x128xf32>
    tpu.vector_store %arg3[%c0_6, %c0_7], %9 {strides = array<i32>} : memref<8x128xf32, #tpu.memory_space<vmem>>, vector<8x128xf32>,
    return
  }
  func.func @transform_0(%arg0: i32) -> (i32, i32) {
    %c0_i32 = arith.constant 0 : i32
    %c0_i32_0 = arith.constant 0 : i32
    return %arg0, %c0_i32 : i32, i32
  }
  func.func @transform_1(%arg0: i32) -> (i32, i32) {
    %c0_i32 = arith.constant 0 : i32
    %c0_i32_0 = arith.constant 0 : i32
    %c0_i32_1 = arith.constant 0 : i32
    return %c0_i32, %c0_i32_0 : i32, i32
  }
  func.func @transform_2(%arg0: i32) -> (i32, i32) {
    %c0_i32 = arith.constant 0 : i32
    %c0_i32_0 = arith.constant 0 : i32
    return %arg0, %c0_i32 : i32, i32
  }
}

module attributes {stable_mosaic.version = 11 : i64} {
  func.func @_conv_bn_lrelu_kernel(%arg0: i32, %arg1: memref<512x48xbf16, #tpu.memory_space<vmem>>, %arg2: memref<48x128xbf16, #tpu.memory_space<vmem>>, %arg3: memref<1x128xf32, #tpu.memory_space<vmem>>, %arg4: memref<1x128xf32, #tpu.memory_space<vmem>>, %arg5: memref<512x128xf32, #tpu.memory_space<vmem>>) attributes {dimension_semantics = [#tpu.dimension_semantics<parallel>], iteration_bounds = array<i64: 1>, scalar_prefetch = 0 : i64, scratch_operands = 0 : i64, tpu.core_type = #tpu.core_type<tc>, window_params = [{transform_indices = @transform_0, window_bounds = array<i64: 512, 48>}, {pipeline_mode = #tpu.pipeline_mode<synchronous>, transform_indices = @transform_1, window_bounds = array<i64: 48, 128>}, {pipeline_mode = #tpu.pipeline_mode<synchronous>, transform_indices = @transform_2, window_bounds = array<i64: 1, 128>}, {pipeline_mode = #tpu.pipeline_mode<synchronous>, transform_indices = @transform_3, window_bounds = array<i64: 1, 128>}, {transform_indices = @transform_4, window_bounds = array<i64: 512, 128>}]} {
    %c0 = arith.constant 0 : index
    %c0_0 = arith.constant 0 : index
    %0 = vector.load %arg1[%c0, %c0_0] : memref<512x48xbf16, #tpu.memory_space<vmem>>, vector<512x48xbf16>
    %c0_1 = arith.constant 0 : index
    %c0_2 = arith.constant 0 : index
    %1 = vector.load %arg2[%c0_1, %c0_2] : memref<48x128xbf16, #tpu.memory_space<vmem>>, vector<48x128xbf16>
    %cst = arith.constant dense<0.000000e+00> : vector<512x128xf32>
    %2 = tpu.matmul %0, %1, %cst {dimension_numbers = #tpu.dot_dimension_numbers<[1], [0], [0], [1], [0, 0, 1, 1], [], []>} : vector<512x48xbf16>, vector<48x128xbf16>, vector<512x128xf32> -> vector<512x128xf32>
    %c0_3 = arith.constant 0 : index
    %c0_4 = arith.constant 0 : index
    %3 = vector.load %arg3[%c0_3, %c0_4] : memref<1x128xf32, #tpu.memory_space<vmem>>, vector<1x128xf32>
    %4 = vector.broadcast %3 : vector<1x128xf32> to vector<512x128xf32>
    %5 = arith.mulf %2, %4 : vector<512x128xf32>
    %c0_5 = arith.constant 0 : index
    %c0_6 = arith.constant 0 : index
    %6 = vector.load %arg4[%c0_5, %c0_6] : memref<1x128xf32, #tpu.memory_space<vmem>>, vector<1x128xf32>
    %7 = vector.broadcast %6 : vector<1x128xf32> to vector<512x128xf32>
    %8 = arith.addf %5, %7 : vector<512x128xf32>
    %cst_7 = arith.constant 0.000000e+00 : f32
    %9 = vector.broadcast %cst_7 : f32 to vector<512x128xf32>
    %10 = arith.cmpf oge, %8, %9 : vector<512x128xf32>
    %cst_8 = arith.constant 2.000000e-01 : f32
    %11 = vector.broadcast %cst_8 : f32 to vector<512x128xf32>
    %12 = arith.mulf %11, %8 : vector<512x128xf32>
    %13 = arith.select %10, %8, %12 : vector<512x128xi1>, vector<512x128xf32>
    %c0_9 = arith.constant 0 : index
    %c0_10 = arith.constant 0 : index
    %14 = vector.load %arg5[%c0_9, %c0_10] : memref<512x128xf32, #tpu.memory_space<vmem>>, vector<512x128xf32>
    tpu.vector_store %arg5[%c0_9, %c0_10], %13 {strides = array<i32>} : memref<512x128xf32, #tpu.memory_space<vmem>>, vector<512x128xf32>,
    return
  }
  func.func @transform_0(%arg0: i32) -> (i32, i32) {
    %c0_i32 = arith.constant 0 : i32
    %c0_i32_0 = arith.constant 0 : i32
    return %arg0, %c0_i32 : i32, i32
  }
  func.func @transform_1(%arg0: i32) -> (i32, i32) {
    %c0_i32 = arith.constant 0 : i32
    %c0_i32_0 = arith.constant 0 : i32
    %c0_i32_1 = arith.constant 0 : i32
    return %c0_i32, %c0_i32_0 : i32, i32
  }
  func.func @transform_2(%arg0: i32) -> (i32, i32) {
    %c0_i32 = arith.constant 0 : i32
    %c0_i32_0 = arith.constant 0 : i32
    %c0_i32_1 = arith.constant 0 : i32
    return %c0_i32, %c0_i32_0 : i32, i32
  }
  func.func @transform_3(%arg0: i32) -> (i32, i32) {
    %c0_i32 = arith.constant 0 : i32
    %c0_i32_0 = arith.constant 0 : i32
    %c0_i32_1 = arith.constant 0 : i32
    return %c0_i32, %c0_i32_0 : i32, i32
  }
  func.func @transform_4(%arg0: i32) -> (i32, i32) {
    %c0_i32 = arith.constant 0 : i32
    %c0_i32_0 = arith.constant 0 : i32
    return %arg0, %c0_i32 : i32, i32
  }
}

</mosaic_0001>

<llo_original>
// kernel: conv2d_relu_forward_nhwc.3
$region0: #{conv2d_relu_forward_nhwc.3}
  #allocation0 [shape = 'u32[]', space=smem, size = 0x4, offset = 0x4, fixed_abs, tag = 'smem constant byte address 0x4 - core index']
  #allocation1 [shape = 'u32[144,128]{1,0:T(1,128)}', space=vmem, size = 0x12000, scoped, tag = 'internal scratch']
  %s0 = inlined_call_operand.vmem [shape: bf16[512,48], index: 0, kind: input, shape index: {}]
  %s1 = inlined_call_operand.vmem [shape: bf16[48,128], index: 1, kind: input, shape index: {}]
  %s2 = inlined_call_operand.vmem [shape: f32[1,128], index: 2, kind: input, shape index: {}]
  %s3 = inlined_call_operand.vmem [shape: f32[1,128], index: 3, kind: input, shape index: {}]
  %s4 = inlined_call_operand.vmem [shape: f32[512,128], index: 4, kind: output, shape index: {}]
  %s5 = sld [smem:[#allocation0]]
  $region26: #{conv2d_relu_forward_nhwc.3} parent=0
    _
  %s7 = ssub.s32 1, %s5
  %s8 = scalar_select 0, %s7, %s5
  // Predicated region
  $region2: #{conv2d_relu_forward_nhwc.3} parent=0 // pred_check
    _
  $region3: #{conv2d_relu_forward_nhwc.3} parent=0 // pred_check_branch
    %10 = sbr.rel (0) target = $region5
  $region4: #{conv2d_relu_forward_nhwc.3} parent=0 // pred_region
    _
  $region5: #{conv2d_relu_forward_nhwc.3} parent=0 // pred_fallthru
    _
  // Predicated region
  $region6: #{conv2d_relu_forward_nhwc.3} parent=0 // pred_check
    _
  $region7: #{conv2d_relu_forward_nhwc.3} parent=0 // pred_check_branch
    %12 = sbr.rel (0) target = $region9
  $region8: #{conv2d_relu_forward_nhwc.3} parent=0 // pred_region
    _
  $region9: #{conv2d_relu_forward_nhwc.3} parent=0 // pred_fallthru
    _
  // Predicated region
  $region10: #{conv2d_relu_forward_nhwc.3} parent=0 // pred_check
    _
  $region11: #{conv2d_relu_forward_nhwc.3} parent=0 // pred_check_branch
    %14 = sbr.rel (0) target = $region13
  $region12: #{conv2d_relu_forward_nhwc.3} parent=0 // pred_region
    _
  $region13: #{conv2d_relu_forward_nhwc.3} parent=0 // pred_fallthru
    _
  // Predicated region
  $region14: #{conv2d_relu_forward_nhwc.3} parent=0 // pred_check
    _
  $region15: #{conv2d_relu_forward_nhwc.3} parent=0 // pred_check_branch
    %16 = sbr.rel (0) target = $region17
  $region16: #{conv2d_relu_forward_nhwc.3} parent=0 // pred_region
    _
  $region17: #{conv2d_relu_forward_nhwc.3} parent=0 // pred_fallthru
    _
  %v18 = vld [vmem:[%s0] sm:$0xf]
  %v19 = vld [vmem:[%s0 + $0x4] sm:$0xf]
  %v20 = vld [vmem:[%s0 + $0x8] sm:$0xf]
  %v21 = vld [vmem:[%s0 + $0xc] sm:$0xf]
  %v22 = vld [vmem:[%s0 + $0x10] sm:$0xf]
  %v23 = vld [vmem:[%s0 + $0x14] sm:$0xf]
  %v24 = vld [vmem:[%s0 + $0x18] sm:$0xf]
  %v25 = vld [vmem:[%s0 + $0x1c] sm:$0xf]
  %v26 = vld [vmem:[%s0 + $0x20] sm:$0xf]
  %v27 = vld [vmem:[%s0 + $0x24] sm:$0xf]
  %v28 = vld [vmem:[%s0 + $0x28] sm:$0xf]
  %v29 = vld [vmem:[%s0 + $0x2c] sm:$0xf]
  %v30 = vld [vmem:[%s0 + $0x30] sm:$0xf]
  %v31 = vld [vmem:[%s0 + $0x34] sm:$0xf]
  %v32 = vld [vmem:[%s0 + $0x38] sm:$0xf]
  %v33 = vld [vmem:[%s0 + $0x3c] sm:$0xf]
  %v34 = vld [vmem:[%s0 + $0x40] sm:$0xf]
  %v35 = vld [vmem:[%s0 + $0x44] sm:$0xf]
  %v36 = vld [vmem:[%s0 + $0x48] sm:$0xf]
  %v37 = vld [vmem:[%s0 + $0x4c] sm:$0xf]
  %v38 = vld [vmem:[%s0 + $0x50] sm:$0xf]
  %v39 = vld [vmem:[%s0 + $0x54] sm:$0xf]
  %v40 = vld [vmem:[%s0 + $0x58] sm:$0xf]
  %v41 = vld [vmem:[%s0 + $0x5c] sm:$0xf]
  %v42 = vld [vmem:[%s0 + $0x60] sm:$0xf]
  %v43 = vld [vmem:[%s0 + $0x64] sm:$0xf]
  %v44 = vld [vmem:[%s0 + $0x68] sm:$0xf]
  %v45 = vld [vmem:[%s0 + $0x6c] sm:$0xf]
  %v46 = vld [vmem:[%s0 + $0x70] sm:$0xf]
  %v47 = vld [vmem:[%s0 + $0x74] sm:$0xf]
  %v48 = vld [vmem:[%s0 + $0x78] sm:$0xf]
  %v49 = vld [vmem:[%s0 + $0x7c] sm:$0xf]
  %v50 = vld [vmem:[%s0 + $0x80] sm:$0xf]
  %v51 = vld [vmem:[%s0 + $0x84] sm:$0xf]
  %v52 = vld [vmem:[%s0 + $0x88] sm:$0xf]
  %v53 = vld [vmem:[%s0 + $0x8c] sm:$0xf]
  %v54 = vld [vmem:[%s0 + $0x90] sm:$0xf]
  %v55 = vld [vmem:[%s0 + $0x94] sm:$0xf]
  %v56 = vld [vmem:[%s0 + $0x98] sm:$0xf]
  %v57 = vld [vmem:[%s0 + $0x9c] sm:$0xf]
  %v58 = vld [vmem:[%s0 + $0xa0] sm:$0xf]
  %v59 = vld [vmem:[%s0 + $0xa4] sm:$0xf]
  %v60 = vld [vmem:[%s0 + $0xa8] sm:$0xf]
  %v61 = vld [vmem:[%s0 + $0xac] sm:$0xf]
  %v62 = vld [vmem:[%s0 + $0xb0] sm:$0xf]
  %v63 = vld [vmem:[%s0 + $0xb4] sm:$0xf]
  %v64 = vld [vmem:[%s0 + $0xb8] sm:$0xf]
  %v65 = vld [vmem:[%s0 + $0xbc] sm:$0xf]
  %v66 = vld [vmem:[%s0 + $0xc0] sm:$0xf]
  %v67 = vld [vmem:[%s0 + $0xc4] sm:$0xf]
  %v68 = vld [vmem:[%s0 + $0xc8] sm:$0xf]
  %v69 = vld [vmem:[%s0 + $0xcc] sm:$0xf]
  %v70 = vld [vmem:[%s0 + $0xd0] sm:$0xf]
  %v71 = vld [vmem:[%s0 + $0xd4] sm:$0xf]
  %v72 = vld [vmem:[%s0 + $0xd8] sm:$0xf]
  %v73 = vld [vmem:[%s0 + $0xdc] sm:$0xf]
  %v74 = vld [vmem:[%s0 + $0xe0] sm:$0xf]
  %v75 = vld [vmem:[%s0 + $0xe4] sm:$0xf]
  %v76 = vld [vmem:[%s0 + $0xe8] sm:$0xf]
  %v77 = vld [vmem:[%s0 + $0xec] sm:$0xf]
  %v78 = vld [vmem:[%s0 + $0xf0] sm:$0xf]
  %v79 = vld [vmem:[%s0 + $0xf4] sm:$0xf]
  %v80 = vld [vmem:[%s0 + $0xf8] sm:$0xf]
  %v81 = vld [vmem:[%s0 + $0xfc] sm:$0xf]
  %v82 = vld [vmem:[%s1] sm:$0xf]
  %v83 = vld [vmem:[%s1 + $0x4] sm:$0xf]
  %v84 = vld [vmem:[%s1 + $0x8] sm:$0xf]
  %v85 = vld [vmem:[%s1 + $0xc] sm:$0xf]
  %v86 = vld [vmem:[%s1 + $0x10] sm:$0xf]
  %v87 = vld [vmem:[%s1 + $0x14] sm:$0xf]
  %v152 = vunpack.c.l.b16 %v18
  %v153 = vunpack.c.l.b16 %v19
  %v154 = vunpack.c.l.b16 %v20
  %v155 = vunpack.c.l.b16 %v21
  %v156 = vunpack.c.l.b16 %v22
  %v157 = vunpack.c.l.b16 %v23
  %v158 = vunpack.c.l.b16 %v24
  %v159 = vunpack.c.l.b16 %v25
  %v160 = vunpack.c.l.b16 %v26
  %v161 = vunpack.c.l.b16 %v27
  %v162 = vunpack.c.l.b16 %v28
  %v163 = vunpack.c.l.b16 %v29
  %v164 = vunpack.c.l.b16 %v30
  %v165 = vunpack.c.l.b16 %v31
  %v166 = vunpack.c.l.b16 %v32
  %v167 = vunpack.c.l.b16 %v33
  %v168 = vunpack.c.l.b16 %v34
  %v169 = vunpack.c.l.b16 %v35
  %v170 = vunpack.c.l.b16 %v36
  %v171 = vunpack.c.l.b16 %v37
  %v172 = vunpack.c.l.b16 %v38
  %v173 = vunpack.c.l.b16 %v39
  %v174 = vunpack.c.l.b16 %v40
  %v175 = vunpack.c.l.b16 %v41
  %v176 = vunpack.c.l.b16 %v42
  %v177 = vunpack.c.l.b16 %v43
  %v178 = vunpack.c.l.b16 %v44
  %v179 = vunpack.c.l.b16 %v45
  %v180 = vunpack.c.l.b16 %v46
  %v181 = vunpack.c.l.b16 %v47
  %v182 = vunpack.c.l.b16 %v48
  %v183 = vunpack.c.l.b16 %v49
  %v184 = vunpack.c.l.b16 %v50
  %v185 = vunpack.c.l.b16 %v51
  %v186 = vunpack.c.l.b16 %v52
  %v187 = vunpack.c.l.b16 %v53
  %v188 = vunpack.c.l.b16 %v54
  %v189 = vunpack.c.l.b16 %v55
  %v190 = vunpack.c.l.b16 %v56
  %v191 = vunpack.c.l.b16 %v57
  %v192 = vunpack.c.l.b16 %v58
  %v193 = vunpack.c.l.b16 %v59
  %v194 = vunpack.c.l.b16 %v60
  %v195 = vunpack.c.l.b16 %v61
  %v196 = vunpack.c.l.b16 %v62
  %v197 = vunpack.c.l.b16 %v63
  %v198 = vunpack.c.l.b16 %v64
  %v199 = vunpack.c.l.b16 %v65
  %v200 = vunpack.c.l.b16 %v66
  %v201 = vunpack.c.l.b16 %v67
  %v202 = vunpack.c.l.b16 %v68
  %v203 = vunpack.c.l.b16 %v69
  %v204 = vunpack.c.l.b16 %v70
  %v205 = vunpack.c.l.b16 %v71
  %v206 = vunpack.c.l.b16 %v72
  %v207 = vunpack.c.l.b16 %v73
  %v208 = vunpack.c.l.b16 %v74
  %v209 = vunpack.c.l.b16 %v75
  %v210 = vunpack.c.l.b16 %v76
  %v211 = vunpack.c.l.b16 %v77
  %v212 = vunpack.c.l.b16 %v78
  %v213 = vunpack.c.l.b16 %v79
  %v214 = vunpack.c.l.b16 %v80
  %v215 = vunpack.c.l.b16 %v81
  %v216 = vpack.c.b16 %v153, %v152
  %v217 = vpack.c.b16 %v155, %v154
  %v218 = vpack.c.b16 %v157, %v156
  %v219 = vpack.c.b16 %v159, %v158
  %v220 = vpack.c.b16 %v161, %v160
  %v221 = vpack.c.b16 %v163, %v162
  %v222 = vpack.c.b16 %v165, %v164
  %v223 = vpack.c.b16 %v167, %v166
  %v224 = vpack.c.b16 %v169, %v168
  %v225 = vpack.c.b16 %v171, %v170
  %v226 = vpack.c.b16 %v173, %v172
  %v227 = vpack.c.b16 %v175, %v174
  %v228 = vpack.c.b16 %v177, %v176
  %v229 = vpack.c.b16 %v179, %v178
  %v230 = vpack.c.b16 %v181, %v180
  %v231 = vpack.c.b16 %v183, %v182
  %v232 = vpack.c.b16 %v185, %v184
  %v233 = vpack.c.b16 %v187, %v186
  %v234 = vpack.c.b16 %v189, %v188
  %v235 = vpack.c.b16 %v191, %v190
  %v236 = vpack.c.b16 %v193, %v192
  %v237 = vpack.c.b16 %v195, %v194
  %v238 = vpack.c.b16 %v197, %v196
  %v239 = vpack.c.b16 %v199, %v198
  %v240 = vpack.c.b16 %v201, %v200
  %v241 = vpack.c.b16 %v203, %v202
  %v242 = vpack.c.b16 %v205, %v204
  %v243 = vpack.c.b16 %v207, %v206
  %v244 = vpack.c.b16 %v209, %v208
  %v245 = vpack.c.b16 %v211, %v210
  %v246 = vpack.c.b16 %v213, %v212
  %v247 = vpack.c.b16 %v215, %v214
  %v254 = vunpack.c.l.b16 %v82
  %v255 = vunpack.c.l.b16 %v83
  %v256 = vunpack.c.l.b16 %v84
  %v257 = vunpack.c.l.b16 %v85
  %v258 = vunpack.c.l.b16 %v86
  %v259 = vunpack.c.l.b16 %v87
  %v260 = vpack.c.b16 %v255, %v254
  %v261 = vpack.c.b16 %v257, %v256
  %v262 = vpack.c.b16 %v259, %v258
  %vm266 = vcmask 392192
  %v268 = vsel %vm266, %v216, 0
  %v271 = vsel %vm266, %v217, 0
  %v274 = vsel %vm266, %v218, 0
  %v277 = vsel %vm266, %v219, 0
  %v280 = vsel %vm266, %v220, 0
  %v283 = vsel %vm266, %v221, 0
  %v286 = vsel %vm266, %v222, 0
  %v289 = vsel %vm266, %v223, 0
  %v292 = vsel %vm266, %v224, 0
  %v295 = vsel %vm266, %v225, 0
  %v298 = vsel %vm266, %v226, 0
  %v301 = vsel %vm266, %v227, 0
  %v304 = vsel %vm266, %v228, 0
  %v307 = vsel %vm266, %v229, 0
  %v310 = vsel %vm266, %v230, 0
  %v313 = vsel %vm266, %v231, 0
  %v316 = vsel %vm266, %v232, 0
  %v319 = vsel %vm266, %v233, 0
  %v322 = vsel %vm266, %v234, 0
  %v325 = vsel %vm266, %v235, 0
  %v328 = vsel %vm266, %v236, 0
  %v331 = vsel %vm266, %v237, 0
  %v334 = vsel %vm266, %v238, 0
  %v337 = vsel %vm266, %v239, 0
  %v340 = vsel %vm266, %v240, 0
  %v343 = vsel %vm266, %v241, 0
  %v346 = vsel %vm266, %v242, 0
  %v349 = vsel %vm266, %v243, 0
  %v352 = vsel %vm266, %v244, 0
  %v355 = vsel %vm266, %v245, 0
  %v358 = vsel %vm266, %v246, 0
  %v361 = vsel %vm266, %v247, 0
  %363 = vmatprep.subr.bf16.mxu0 0
  %364 = vmatpush1.bf16.msra.mxu0 %v260
  %365 = vmatprep.subr.bf16.mxu0 0
  %366 = vmatpush1.bf16.msra.mxu0 %v261
  %367 = vmatprep.subr.bf16.mxu0 0
  %368 = vmatpush1.bf16.msra.mxu0 %v262
  %369 = vmatprep.subr.bf16.mxu0 0
  %370 = vmatpush1.bf16.msra.mxu0 0
  %371 = vmatprep.subr.bf16.mxu0 0
  %372 = vmatpush1.bf16.msra.mxu0 0
  %373 = vmatprep.subr.bf16.mxu0 0
  %374 = vmatpush1.bf16.msra.mxu0 0
  %375 = vmatprep.subr.bf16.mxu0 0
  %376 = vmatpush1.bf16.msra.mxu0 0
  %377 = vmatprep.subr.bf16.mxu0 0
  %378 = vmatpush1.bf16.msra.mxu0 0
  %379 = vmatprep.subr.bf16.mxu0 0
  %380 = vmatpush1.bf16.msra.mxu0 0
  %381 = vmatprep.subr.bf16.mxu0 0
  %382 = vmatpush1.bf16.msra.mxu0 0
  %383 = vmatprep.subr.bf16.mxu0 0
  %384 = vmatpush1.bf16.msra.mxu0 0
  %385 = vmatprep.subr.bf16.mxu0 0
  %386 = vmatpush1.bf16.msra.mxu0 0
  %387 = vmatprep.subr.bf16.mxu0 0
  %388 = vmatpush1.bf16.msra.mxu0 0
  %389 = vmatprep.subr.bf16.mxu0 0
  %390 = vmatpush1.bf16.msra.mxu0 0
  %391 = vmatprep.subr.bf16.mxu0 0
  %392 = vmatpush1.bf16.msra.mxu0 0
  %393 = vmatprep.subr.bf16.mxu0 0
  %394 = vmatpush1.bf16.msra.mxu0 0
  %395 = vmatprep.mubr.bf16.mxu0 0
  %396 = vmatmul.mubr.bf16.gmra.mrb[0].mxu0 %v268
  %v397 = vpop.f32.mrb[0].mxu0
  %v398 = vadd.f32 0.0, %v397
  %v399 = vpop.f32.mrb[0].mxu0
  %v400 = vpop.f32.mrb[0].mxu0
  %v401 = vadd.f32 0.0, %v400
  %v402 = vpop.f32.mrb[0].mxu0
  %403 = vmatprep.mubr.bf16.mxu0 0
  %404 = vmatmul.mubr.bf16.gmra.mrb[0].mxu0 %v271
  %v405 = vpop.f32.mrb[0].mxu0
  %v406 = vadd.f32 0.0, %v405
  %v407 = vpop.f32.mrb[0].mxu0
  %v408 = vpop.f32.mrb[0].mxu0
  %v409 = vadd.f32 0.0, %v408
  %v410 = vpop.f32.mrb[0].mxu0
  %411 = vmatprep.mubr.bf16.mxu0 0
  %412 = vmatmul.mubr.bf16.gmra.mrb[0].mxu0 %v274
  %v413 = vpop.f32.mrb[0].mxu0
  %v414 = vadd.f32 0.0, %v413
  %v415 = vpop.f32.mrb[0].mxu0
  %v416 = vpop.f32.mrb[0].mxu0
  %v417 = vadd.f32 0.0, %v416
  %v418 = vpop.f32.mrb[0].mxu0
  %419 = vmatprep.mubr.bf16.mxu0 0
  %420 = vmatmul.mubr.bf16.gmra.mrb[0].mxu0 %v277
  %v421 = vpop.f32.mrb[0].mxu0
  %v422 = vadd.f32 0.0, %v421
  %v423 = vpop.f32.mrb[0].mxu0
  %v424 = vpop.f32.mrb[0].mxu0
  %v425 = vadd.f32 0.0, %v424
  %v426 = vpop.f32.mrb[0].mxu0
  %427 = vmatprep.mubr.bf16.mxu0 0
  %428 = vmatmul.mubr.bf16.gmra.mrb[0].mxu0 %v280
  %v429 = vpop.f32.mrb[0].mxu0
  %v430 = vadd.f32 0.0, %v429
  %v431 = vpop.f32.mrb[0].mxu0
  %v432 = vpop.f32.mrb[0].mxu0
  %v433 = vadd.f32 0.0, %v432
  %v434 = vpop.f32.mrb[0].mxu0
  %435 = vmatprep.mubr.bf16.mxu0 0
  %436 = vmatmul.mubr.bf16.gmra.mrb[0].mxu0 %v283
  %v437 = vpop.f32.mrb[0].mxu0
  %v438 = vadd.f32 0.0, %v437
  %v439 = vpop.f32.mrb[0].mxu0
  %v440 = vpop.f32.mrb[0].mxu0
  %v441 = vadd.f32 0.0, %v440
  %v442 = vpop.f32.mrb[0].mxu0
  %443 = vmatprep.mubr.bf16.mxu0 0
  %444 = vmatmul.mubr.bf16.gmra.mrb[0].mxu0 %v286
  %v445 = vpop.f32.mrb[0].mxu0
  %v446 = vadd.f32 0.0, %v445
  %v447 = vpop.f32.mrb[0].mxu0
  %v448 = vpop.f32.mrb[0].mxu0
  %v449 = vadd.f32 0.0, %v448
  %v450 = vpop.f32.mrb[0].mxu0
  %451 = vmatprep.mubr.bf16.mxu0 0
  %452 = vmatmul.mubr.bf16.gmra.mrb[0].mxu0 %v289
  %v453 = vpop.f32.mrb[0].mxu0
  %v454 = vadd.f32 0.0, %v453
  %v455 = vpop.f32.mrb[0].mxu0
  %v456 = vpop.f32.mrb[0].mxu0
  %v457 = vadd.f32 0.0, %v456
  %v458 = vpop.f32.mrb[0].mxu0
  %459 = vmatprep.mubr.bf16.mxu0 0
  %460 = vmatmul.mubr.bf16.gmra.mrb[0].mxu0 %v292
  %v461 = vpop.f32.mrb[0].mxu0
  %v462 = vadd.f32 0.0, %v461
  %v463 = vpop.f32.mrb[0].mxu0
  %v464 = vpop.f32.mrb[0].mxu0
  %v465 = vadd.f32 0.0, %v464
  %v466 = vpop.f32.mrb[0].mxu0
  %467 = vmatprep.mubr.bf16.mxu0 0
  %468 = vmatmul.mubr.bf16.gmra.mrb[0].mxu0 %v295
  %v469 = vpop.f32.mrb[0].mxu0
  %v470 = vadd.f32 0.0, %v469
  %v471 = vpop.f32.mrb[0].mxu0
  %v472 = vpop.f32.mrb[0].mxu0
  %v473 = vadd.f32 0.0, %v472
  %v474 = vpop.f32.mrb[0].mxu0
  %475 = vmatprep.mubr.bf16.mxu0 0
  %476 = vmatmul.mubr.bf16.gmra.mrb[0].mxu0 %v298
  %v477 = vpop.f32.mrb[0].mxu0
  %v478 = vadd.f32 0.0, %v477
  %v479 = vpop.f32.mrb[0].mxu0
  %v480 = vpop.f32.mrb[0].mxu0
  %v481 = vadd.f32 0.0, %v480
  %v482 = vpop.f32.mrb[0].mxu0
  %483 = vmatprep.mubr.bf16.mxu0 0
  %484 = vmatmul.mubr.bf16.gmra.mrb[0].mxu0 %v301
  %v485 = vpop.f32.mrb[0].mxu0
  %v486 = vadd.f32 0.0, %v485
  %v487 = vpop.f32.mrb[0].mxu0
  %v488 = vpop.f32.mrb[0].mxu0
  %v489 = vadd.f32 0.0, %v488
  %v490 = vpop.f32.mrb[0].mxu0
  %491 = vmatprep.mubr.bf16.mxu0 0
  %492 = vmatmul.mubr.bf16.gmra.mrb[0].mxu0 %v304
  %v493 = vpop.f32.mrb[0].mxu0
  %v494 = vadd.f32 0.0, %v493
  %v495 = vpop.f32.mrb[0].mxu0
  %v496 = vpop.f32.mrb[0].mxu0
  %v497 = vadd.f32 0.0, %v496
  %v498 = vpop.f32.mrb[0].mxu0
  %499 = vmatprep.mubr.bf16.mxu0 0
  %500 = vmatmul.mubr.bf16.gmra.mrb[0].mxu0 %v307
  %v501 = vpop.f32.mrb[0].mxu0
  %v502 = vadd.f32 0.0, %v501
  %v503 = vpop.f32.mrb[0].mxu0
  %v504 = vpop.f32.mrb[0].mxu0
  %v505 = vadd.f32 0.0, %v504
  %v506 = vpop.f32.mrb[0].mxu0
  %507 = vmatprep.mubr.bf16.mxu0 0
  %508 = vmatmul.mubr.bf16.gmra.mrb[0].mxu0 %v310
  %v509 = vpop.f32.mrb[0].mxu0
  %v510 = vadd.f32 0.0, %v509
  %v511 = vpop.f32.mrb[0].mxu0
  %v512 = vpop.f32.mrb[0].mxu0
  %v513 = vadd.f32 0.0, %v512
  %v514 = vpop.f32.mrb[0].mxu0
  %515 = vmatprep.mubr.bf16.mxu0 0
  %516 = vmatmul.mubr.bf16.gmra.mrb[0].mxu0 %v313
  %v517 = vpop.f32.mrb[0].mxu0
  %v518 = vadd.f32 0.0, %v517
  %v519 = vpop.f32.mrb[0].mxu0
  %v520 = vpop.f32.mrb[0].mxu0
  %v521 = vadd.f32 0.0, %v520
  %v522 = vpop.f32.mrb[0].mxu0
  %523 = vmatprep.mubr.bf16.mxu0 0
  %524 = vmatmul.mubr.bf16.gmra.mrb[0].mxu0 %v316
  %v525 = vpop.f32.mrb[0].mxu0
  %v526 = vadd.f32 0.0, %v525
  %v527 = vpop.f32.mrb[0].mxu0
  %v528 = vpop.f32.mrb[0].mxu0
  %v529 = vadd.f32 0.0, %v528
  %v530 = vpop.f32.mrb[0].mxu0
  %531 = vmatprep.mubr.bf16.mxu0 0
  %532 = vmatmul.mubr.bf16.gmra.mrb[0].mxu0 %v319
  %v533 = vpop.f32.mrb[0].mxu0
  %v534 = vadd.f32 0.0, %v533
  %v535 = vpop.f32.mrb[0].mxu0
  %v536 = vpop.f32.mrb[0].mxu0
  %v537 = vadd.f32 0.0, %v536
  %v538 = vpop.f32.mrb[0].mxu0
  %539 = vmatprep.mubr.bf16.mxu0 0
  %540 = vmatmul.mubr.bf16.gmra.mrb[0].mxu0 %v322
  %v541 = vpop.f32.mrb[0].mxu0
  %v542 = vadd.f32 0.0, %v541
  %v543 = vpop.f32.mrb[0].mxu0
  %v544 = vpop.f32.mrb[0].mxu0
  %v545 = vadd.f32 0.0, %v544
  %v546 = vpop.f32.mrb[0].mxu0
  %547 = vmatprep.mubr.bf16.mxu0 0
  %548 = vmatmul.mubr.bf16.gmra.mrb[0].mxu0 %v325
  %v549 = vpop.f32.mrb[0].mxu0
  %v550 = vadd.f32 0.0, %v549
  %v551 = vpop.f32.mrb[0].mxu0
  %v552 = vpop.f32.mrb[0].mxu0
  %v553 = vadd.f32 0.0, %v552
  %v554 = vpop.f32.mrb[0].mxu0
  %555 = vmatprep.mubr.bf16.mxu0 0
  %556 = vmatmul.mubr.bf16.gmra.mrb[0].mxu0 %v328
  %v557 = vpop.f32.mrb[0].mxu0
  %v558 = vadd.f32 0.0, %v557
  %v559 = vpop.f32.mrb[0].mxu0
  %v560 = vpop.f32.mrb[0].mxu0
  %v561 = vadd.f32 0.0, %v560
  %v562 = vpop.f32.mrb[0].mxu0
  %563 = vmatprep.mubr.bf16.mxu0 0
  %564 = vmatmul.mubr.bf16.gmra.mrb[0].mxu0 %v331
  %v565 = vpop.f32.mrb[0].mxu0
  %v566 = vadd.f32 0.0, %v565
  %v567 = vpop.f32.mrb[0].mxu0
  %v568 = vpop.f32.mrb[0].mxu0
  %v569 = vadd.f32 0.0, %v568
  %v570 = vpop.f32.mrb[0].mxu0
  %571 = vmatprep.mubr.bf16.mxu0 0
  %572 = vmatmul.mubr.bf16.gmra.mrb[0].mxu0 %v334
  %v573 = vpop.f32.mrb[0].mxu0
  %v574 = vadd.f32 0.0, %v573
  %v575 = vpop.f32.mrb[0].mxu0
  %v576 = vpop.f32.mrb[0].mxu0
  %v577 = vadd.f32 0.0, %v576
  %v578 = vpop.f32.mrb[0].mxu0
  %579 = vmatprep.mubr.bf16.mxu0 0
  %580 = vmatmul.mubr.bf16.gmra.mrb[0].mxu0 %v337
  %v581 = vpop.f32.mrb[0].mxu0
  %v582 = vadd.f32 0.0, %v581
  %v583 = vpop.f32.mrb[0].mxu0
  %v584 = vpop.f32.mrb[0].mxu0
  %v585 = vadd.f32 0.0, %v584
  %v586 = vpop.f32.mrb[0].mxu0
  %587 = vmatprep.mubr.bf16.mxu0 0
  %588 = vmatmul.mubr.bf16.gmra.mrb[0].mxu0 %v340
  %v589 = vpop.f32.mrb[0].mxu0
  %v590 = vadd.f32 0.0, %v589
  %v591 = vpop.f32.mrb[0].mxu0
  %v592 = vpop.f32.mrb[0].mxu0
  %v593 = vadd.f32 0.0, %v592
  %v594 = vpop.f32.mrb[0].mxu0
  %595 = vmatprep.mubr.bf16.mxu0 0
  %596 = vmatmul.mubr.bf16.gmra.mrb[0].mxu0 %v343
  %v597 = vpop.f32.mrb[0].mxu0
  %v598 = vadd.f32 0.0, %v597
  %v599 = vpop.f32.mrb[0].mxu0
  %v600 = vpop.f32.mrb[0].mxu0
  %v601 = vadd.f32 0.0, %v600
  %v602 = vpop.f32.mrb[0].mxu0
  %603 = vmatprep.mubr.bf16.mxu0 0
  %604 = vmatmul.mubr.bf16.gmra.mrb[0].mxu0 %v346
  %v605 = vpop.f32.mrb[0].mxu0
  %v606 = vadd.f32 0.0, %v605
  %v607 = vpop.f32.mrb[0].mxu0
  %v608 = vpop.f32.mrb[0].mxu0
  %v609 = vadd.f32 0.0, %v608
  %v610 = vpop.f32.mrb[0].mxu0
  %611 = vmatprep.mubr.bf16.mxu0 0
  %612 = vmatmul.mubr.bf16.gmra.mrb[0].mxu0 %v349
  %v613 = vpop.f32.mrb[0].mxu0
  %v614 = vadd.f32 0.0, %v613
  %v615 = vpop.f32.mrb[0].mxu0
  %v616 = vpop.f32.mrb[0].mxu0
  %v617 = vadd.f32 0.0, %v616
  %v618 = vpop.f32.mrb[0].mxu0
  %619 = vmatprep.mubr.bf16.mxu0 0
  %620 = vmatmul.mubr.bf16.gmra.mrb[0].mxu0 %v352
  %v621 = vpop.f32.mrb[0].mxu0
  %v622 = vadd.f32 0.0, %v621
  %v623 = vpop.f32.mrb[0].mxu0
  %v624 = vpop.f32.mrb[0].mxu0
  %v625 = vadd.f32 0.0, %v624
  %v626 = vpop.f32.mrb[0].mxu0
  %627 = vmatprep.mubr.bf16.mxu0 0
  %628 = vmatmul.mubr.bf16.gmra.mrb[0].mxu0 %v355
  %v629 = vpop.f32.mrb[0].mxu0
  %v630 = vadd.f32 0.0, %v629
  %v631 = vpop.f32.mrb[0].mxu0
  %v632 = vpop.f32.mrb[0].mxu0
  %v633 = vadd.f32 0.0, %v632
  %v634 = vpop.f32.mrb[0].mxu0
  %635 = vmatprep.mubr.bf16.mxu0 0
  %636 = vmatmul.mubr.bf16.gmra.mrb[0].mxu0 %v358
  %v637 = vpop.f32.mrb[0].mxu0
  %v638 = vadd.f32 0.0, %v637
  %v639 = vpop.f32.mrb[0].mxu0
  %v640 = vpop.f32.mrb[0].mxu0
  %v641 = vadd.f32 0.0, %v640
  %v642 = vpop.f32.mrb[0].mxu0
  %643 = vmatprep.mubr.bf16.mxu0 0
  %644 = vmatmul.mubr.bf16.gmra.mrb[0].mxu0 %v361
  %v645 = vpop.f32.mrb[0].mxu0
  %v646 = vadd.f32 0.0, %v645
  %v647 = vpop.f32.mrb[0].mxu0
  %v648 = vpop.f32.mrb[0].mxu0
  %v649 = vadd.f32 0.0, %v648
  %v650 = vpop.f32.mrb[0].mxu0
  %651 = vdwg.mxu0
  %v652 = vld [vmem:[%s2] sm:$0x1]
  %v654 = vlaneseq
  %v655 = vshrl.u32 %v654, 7
  %v656 = vsub.s32 0, %v655
  %v657 = vrot.slane %v652, %v656
  %v659 = vmul.f32 %v398, %v657
  %v660 = vmul.f32 %v401, %v657
  %v661 = vmul.f32 %v406, %v657
  %v662 = vmul.f32 %v409, %v657
  %v663 = vmul.f32 %v414, %v657
  %v664 = vmul.f32 %v417, %v657
  %v665 = vmul.f32 %v422, %v657
  %v666 = vmul.f32 %v425, %v657
  %v667 = vmul.f32 %v430, %v657
  %v668 = vmul.f32 %v433, %v657
  %v669 = vmul.f32 %v438, %v657
  %v670 = vmul.f32 %v441, %v657
  %v671 = vmul.f32 %v446, %v657
  %v672 = vmul.f32 %v449, %v657
  %v673 = vmul.f32 %v454, %v657
  %v674 = vmul.f32 %v457, %v657
  %v675 = vmul.f32 %v462, %v657
  %v676 = vmul.f32 %v465, %v657
  %v677 = vmul.f32 %v470, %v657
  %v678 = vmul.f32 %v473, %v657
  %v679 = vmul.f32 %v478, %v657
  %v680 = vmul.f32 %v481, %v657
  %v681 = vmul.f32 %v486, %v657
  %v682 = vmul.f32 %v489, %v657
  %v683 = vmul.f32 %v494, %v657
  %v684 = vmul.f32 %v497, %v657
  %v685 = vmul.f32 %v502, %v657
  %v686 = vmul.f32 %v505, %v657
  %v687 = vmul.f32 %v510, %v657
  %v688 = vmul.f32 %v513, %v657
  %v689 = vmul.f32 %v518, %v657
  %v690 = vmul.f32 %v521, %v657
  %v691 = vmul.f32 %v526, %v657
  %v692 = vmul.f32 %v529, %v657
  %v693 = vmul.f32 %v534, %v657
  %v694 = vmul.f32 %v537, %v657
  %v695 = vmul.f32 %v542, %v657
  %v696 = vmul.f32 %v545, %v657
  %v697 = vmul.f32 %v550, %v657
  %v698 = vmul.f32 %v553, %v657
  %v699 = vmul.f32 %v558, %v657
  %v700 = vmul.f32 %v561, %v657
  %v701 = vmul.f32 %v566, %v657
  %v702 = vmul.f32 %v569, %v657
  %v703 = vmul.f32 %v574, %v657
  %v704 = vmul.f32 %v577, %v657
  %v705 = vmul.f32 %v582, %v657
  %v706 = vmul.f32 %v585, %v657
  %v707 = vmul.f32 %v590, %v657
  %v708 = vmul.f32 %v593, %v657
  %v709 = vmul.f32 %v598, %v657
  %v710 = vmul.f32 %v601, %v657
  %v711 = vmul.f32 %v606, %v657
  %v712 = vmul.f32 %v609, %v657
  %v713 = vmul.f32 %v614, %v657
  %v714 = vmul.f32 %v617, %v657
  %v715 = vmul.f32 %v622, %v657
  %v716 = vmul.f32 %v625, %v657
  %v717 = vmul.f32 %v630, %v657
  %v718 = vmul.f32 %v633, %v657
  %v719 = vmul.f32 %v638, %v657
  %v720 = vmul.f32 %v641, %v657
  %v721 = vmul.f32 %v646, %v657
  %v722 = vmul.f32 %v649, %v657
  %v723 = vld [vmem:[%s3] sm:$0x1]
  %v725 = vlaneseq
  %v726 = vshrl.u32 %v725, 7
  %v727 = vsub.s32 0, %v726
  %v728 = vrot.slane %v723, %v727
  %v730 = vadd.f32 %v659, %v728
  %v731 = vadd.f32 %v660, %v728
  %v732 = vadd.f32 %v661, %v728
  %v733 = vadd.f32 %v662, %v728
  %v734 = vadd.f32 %v663, %v728
  %v735 = vadd.f32 %v664, %v728
  %v736 = vadd.f32 %v665, %v728
  %v737 = vadd.f32 %v666, %v728
  %v738 = vadd.f32 %v667, %v728
  %v739 = vadd.f32 %v668, %v728
  %v740 = vadd.f32 %v669, %v728
  %v741 = vadd.f32 %v670, %v728
  %v742 = vadd.f32 %v671, %v728
  %v743 = vadd.f32 %v672, %v728
  %v744 = vadd.f32 %v673, %v728
  %v745 = vadd.f32 %v674, %v728
  %v746 = vadd.f32 %v675, %v728
  %v747 = vadd.f32 %v676, %v728
  %v748 = vadd.f32 %v677, %v728
  %v749 = vadd.f32 %v678, %v728
  %v750 = vadd.f32 %v679, %v728
  %v751 = vadd.f32 %v680, %v728
  %v752 = vadd.f32 %v681, %v728
  %v753 = vadd.f32 %v682, %v728
  %v754 = vadd.f32 %v683, %v728
  %v755 = vadd.f32 %v684, %v728
  %v756 = vadd.f32 %v685, %v728
  %v757 = vadd.f32 %v686, %v728
  %v758 = vadd.f32 %v687, %v728
  %v759 = vadd.f32 %v688, %v728
  %v760 = vadd.f32 %v689, %v728
  %v761 = vadd.f32 %v690, %v728
  %v762 = vadd.f32 %v691, %v728
  %v763 = vadd.f32 %v692, %v728
  %v764 = vadd.f32 %v693, %v728
  %v765 = vadd.f32 %v694, %v728
  %v766 = vadd.f32 %v695, %v728
  %v767 = vadd.f32 %v696, %v728
  %v768 = vadd.f32 %v697, %v728
  %v769 = vadd.f32 %v698, %v728
  %v770 = vadd.f32 %v699, %v728
  %v771 = vadd.f32 %v700, %v728
  %v772 = vadd.f32 %v701, %v728
  %v773 = vadd.f32 %v702, %v728
  %v774 = vadd.f32 %v703, %v728
  %v775 = vadd.f32 %v704, %v728
  %v776 = vadd.f32 %v705, %v728
  %v777 = vadd.f32 %v706, %v728
  %v778 = vadd.f32 %v707, %v728
  %v779 = vadd.f32 %v708, %v728
  %v780 = vadd.f32 %v709, %v728
  %v781 = vadd.f32 %v710, %v728
  %v782 = vadd.f32 %v711, %v728
  %v783 = vadd.f32 %v712, %v728
  %v784 = vadd.f32 %v713, %v728
  %v785 = vadd.f32 %v714, %v728
  %v786 = vadd.f32 %v715, %v728
  %v787 = vadd.f32 %v716, %v728
  %v788 = vadd.f32 %v717, %v728
  %v789 = vadd.f32 %v718, %v728
  %v790 = vadd.f32 %v719, %v728
  %v791 = vadd.f32 %v720, %v728
  %v792 = vadd.f32 %v721, %v728
  %v793 = vadd.f32 %v722, %v728
  %vm794 = vcmp.ge.f32.partialorder %v730, 0.0
  %vm795 = vcmp.ge.f32.partialorder %v731, 0.0
  %vm796 = vcmp.ge.f32.partialorder %v732, 0.0
  %vm797 = vcmp.ge.f32.partialorder %v733, 0.0
  %vm798 = vcmp.ge.f32.partialorder %v734, 0.0
  %vm799 = vcmp.ge.f32.partialorder %v735, 0.0
  %vm800 = vcmp.ge.f32.partialorder %v736, 0.0
  %vm801 = vcmp.ge.f32.partialorder %v737, 0.0
  %vm802 = vcmp.ge.f32.partialorder %v738, 0.0
  %vm803 = vcmp.ge.f32.partialorder %v739, 0.0
  %vm804 = vcmp.ge.f32.partialorder %v740, 0.0
  %vm805 = vcmp.ge.f32.partialorder %v741, 0.0
  %vm806 = vcmp.ge.f32.partialorder %v742, 0.0
  %vm807 = vcmp.ge.f32.partialorder %v743, 0.0
  %vm808 = vcmp.ge.f32.partialorder %v744, 0.0
  %vm809 = vcmp.ge.f32.partialorder %v745, 0.0
  %vm810 = vcmp.ge.f32.partialorder %v746, 0.0
  %vm811 = vcmp.ge.f32.partialorder %v747, 0.0
  %vm812 = vcmp.ge.f32.partialorder %v748, 0.0
  %vm813 = vcmp.ge.f32.partialorder %v749, 0.0
  %vm814 = vcmp.ge.f32.partialorder %v750, 0.0
  %vm815 = vcmp.ge.f32.partialorder %v751, 0.0
  %vm816 = vcmp.ge.f32.partialorder %v752, 0.0
  %vm817 = vcmp.ge.f32.partialorder %v753, 0.0
  %vm818 = vcmp.ge.f32.partialorder %v754, 0.0
  %vm819 = vcmp.ge.f32.partialorder %v755, 0.0
  %vm820 = vcmp.ge.f32.partialorder %v756, 0.0
  %vm821 = vcmp.ge.f32.partialorder %v757, 0.0
  %vm822 = vcmp.ge.f32.partialorder %v758, 0.0
  %vm823 = vcmp.ge.f32.partialorder %v759, 0.0
  %vm824 = vcmp.ge.f32.partialorder %v760, 0.0
  %vm825 = vcmp.ge.f32.partialorder %v761, 0.0
  %vm826 = vcmp.ge.f32.partialorder %v762, 0.0
  %vm827 = vcmp.ge.f32.partialorder %v763, 0.0
  %vm828 = vcmp.ge.f32.partialorder %v764, 0.0
  %vm829 = vcmp.ge.f32.partialorder %v765, 0.0
  %vm830 = vcmp.ge.f32.partialorder %v766, 0.0
  %vm831 = vcmp.ge.f32.partialorder %v767, 0.0
  %vm832 = vcmp.ge.f32.partialorder %v768, 0.0
  %vm833 = vcmp.ge.f32.partialorder %v769, 0.0
  %vm834 = vcmp.ge.f32.partialorder %v770, 0.0
  %vm835 = vcmp.ge.f32.partialorder %v771, 0.0
  %vm836 = vcmp.ge.f32.partialorder %v772, 0.0
  %vm837 = vcmp.ge.f32.partialorder %v773, 0.0
  %vm838 = vcmp.ge.f32.partialorder %v774, 0.0
  %vm839 = vcmp.ge.f32.partialorder %v775, 0.0
  %vm840 = vcmp.ge.f32.partialorder %v776, 0.0
  %vm841 = vcmp.ge.f32.partialorder %v777, 0.0
  %vm842 = vcmp.ge.f32.partialorder %v778, 0.0
  %vm843 = vcmp.ge.f32.partialorder %v779, 0.0
  %vm844 = vcmp.ge.f32.partialorder %v780, 0.0
  %vm845 = vcmp.ge.f32.partialorder %v781, 0.0
  %vm846 = vcmp.ge.f32.partialorder %v782, 0.0
  %vm847 = vcmp.ge.f32.partialorder %v783, 0.0
  %vm848 = vcmp.ge.f32.partialorder %v784, 0.0
  %vm849 = vcmp.ge.f32.partialorder %v785, 0.0
  %vm850 = vcmp.ge.f32.partialorder %v786, 0.0
  %vm851 = vcmp.ge.f32.partialorder %v787, 0.0
  %vm852 = vcmp.ge.f32.partialorder %v788, 0.0
  %vm853 = vcmp.ge.f32.partialorder %v789, 0.0
  %vm854 = vcmp.ge.f32.partialorder %v790, 0.0
  %vm855 = vcmp.ge.f32.partialorder %v791, 0.0
  %vm856 = vcmp.ge.f32.partialorder %v792, 0.0
  %vm857 = vcmp.ge.f32.partialorder %v793, 0.0
  %v858 = vmul.f32 %v730, 0.2
  %v859 = vmul.f32 %v731, 0.2
  %v860 = vmul.f32 %v732, 0.2
  %v861 = vmul.f32 %v733, 0.2
  %v862 = vmul.f32 %v734, 0.2
  %v863 = vmul.f32 %v735, 0.2
  %v864 = vmul.f32 %v736, 0.2
  %v865 = vmul.f32 %v737, 0.2
  %v866 = vmul.f32 %v738, 0.2
  %v867 = vmul.f32 %v739, 0.2
  %v868 = vmul.f32 %v740, 0.2
  %v869 = vmul.f32 %v741, 0.2
  %v870 = vmul.f32 %v742, 0.2
  %v871 = vmul.f32 %v743, 0.2
  %v872 = vmul.f32 %v744, 0.2
  %v873 = vmul.f32 %v745, 0.2
  %v874 = vmul.f32 %v746, 0.2
  %v875 = vmul.f32 %v747, 0.2
  %v876 = vmul.f32 %v748, 0.2
  %v877 = vmul.f32 %v749, 0.2
  %v878 = vmul.f32 %v750, 0.2
  %v879 = vmul.f32 %v751, 0.2
  %v880 = vmul.f32 %v752, 0.2
  %v881 = vmul.f32 %v753, 0.2
  %v882 = vmul.f32 %v754, 0.2
  %v883 = vmul.f32 %v755, 0.2
  %v884 = vmul.f32 %v756, 0.2
  %v885 = vmul.f32 %v757, 0.2
  %v886 = vmul.f32 %v758, 0.2
  %v887 = vmul.f32 %v759, 0.2
  %v888 = vmul.f32 %v760, 0.2
  %v889 = vmul.f32 %v761, 0.2
  %v890 = vmul.f32 %v762, 0.2
  %v891 = vmul.f32 %v763, 0.2
  %v892 = vmul.f32 %v764, 0.2
  %v893 = vmul.f32 %v765, 0.2
  %v894 = vmul.f32 %v766, 0.2
  %v895 = vmul.f32 %v767, 0.2
  %v896 = vmul.f32 %v768, 0.2
  %v897 = vmul.f32 %v769, 0.2
  %v898 = vmul.f32 %v770, 0.2
  %v899 = vmul.f32 %v771, 0.2
  %v900 = vmul.f32 %v772, 0.2
  %v901 = vmul.f32 %v773, 0.2
  %v902 = vmul.f32 %v774, 0.2
  %v903 = vmul.f32 %v775, 0.2
  %v904 = vmul.f32 %v776, 0.2
  %v905 = vmul.f32 %v777, 0.2
  %v906 = vmul.f32 %v778, 0.2
  %v907 = vmul.f32 %v779, 0.2
  %v908 = vmul.f32 %v780, 0.2
  %v909 = vmul.f32 %v781, 0.2
  %v910 = vmul.f32 %v782, 0.2
  %v911 = vmul.f32 %v783, 0.2
  %v912 = vmul.f32 %v784, 0.2
  %v913 = vmul.f32 %v785, 0.2
  %v914 = vmul.f32 %v786, 0.2
  %v915 = vmul.f32 %v787, 0.2
  %v916 = vmul.f32 %v788, 0.2
  %v917 = vmul.f32 %v789, 0.2
  %v918 = vmul.f32 %v790, 0.2
  %v919 = vmul.f32 %v791, 0.2
  %v920 = vmul.f32 %v792, 0.2
  %v921 = vmul.f32 %v793, 0.2
  %v922 = vsel %vm794, %v730, %v858
  %v923 = vsel %vm795, %v731, %v859
  %v924 = vsel %vm796, %v732, %v860
  %v925 = vsel %vm797, %v733, %v861
  %v926 = vsel %vm798, %v734, %v862
  %v927 = vsel %vm799, %v735, %v863
  %v928 = vsel %vm800, %v736, %v864
  %v929 = vsel %vm801, %v737, %v865
  %v930 = vsel %vm802, %v738, %v866
  %v931 = vsel %vm803, %v739, %v867
  %v932 = vsel %vm804, %v740, %v868
  %v933 = vsel %vm805, %v741, %v869
  %v934 = vsel %vm806, %v742, %v870
  %v935 = vsel %vm807, %v743, %v871
  %v936 = vsel %vm808, %v744, %v872
  %v937 = vsel %vm809, %v745, %v873
  %v938 = vsel %vm810, %v746, %v874
  %v939 = vsel %vm811, %v747, %v875
  %v940 = vsel %vm812, %v748, %v876
  %v941 = vsel %vm813, %v749, %v877
  %v942 = vsel %vm814, %v750, %v878
  %v943 = vsel %vm815, %v751, %v879
  %v944 = vsel %vm816, %v752, %v880
  %v945 = vsel %vm817, %v753, %v881
  %v946 = vsel %vm818, %v754, %v882
  %v947 = vsel %vm819, %v755, %v883
  %v948 = vsel %vm820, %v756, %v884
  %v949 = vsel %vm821, %v757, %v885
  %v950 = vsel %vm822, %v758, %v886
  %v951 = vsel %vm823, %v759, %v887
  %v952 = vsel %vm824, %v760, %v888
  %v953 = vsel %vm825, %v761, %v889
  %v954 = vsel %vm826, %v762, %v890
  %v955 = vsel %vm827, %v763, %v891
  %v956 = vsel %vm828, %v764, %v892
  %v957 = vsel %vm829, %v765, %v893
  %v958 = vsel %vm830, %v766, %v894
  %v959 = vsel %vm831, %v767, %v895
  %v960 = vsel %vm832, %v768, %v896
  %v961 = vsel %vm833, %v769, %v897
  %v962 = vsel %vm834, %v770, %v898
  %v963 = vsel %vm835, %v771, %v899
  %v964 = vsel %vm836, %v772, %v900
  %v965 = vsel %vm837, %v773, %v901
  %v966 = vsel %vm838, %v774, %v902
  %v967 = vsel %vm839, %v775, %v903
  %v968 = vsel %vm840, %v776, %v904
  %v969 = vsel %vm841, %v777, %v905
  %v970 = vsel %vm842, %v778, %v906
  %v971 = vsel %vm843, %v779, %v907
  %v972 = vsel %vm844, %v780, %v908
  %v973 = vsel %vm845, %v781, %v909
  %v974 = vsel %vm846, %v782, %v910
  %v975 = vsel %vm847, %v783, %v911
  %v976 = vsel %vm848, %v784, %v912
  %v977 = vsel %vm849, %v785, %v913
  %v978 = vsel %vm850, %v786, %v914
  %v979 = vsel %vm851, %v787, %v915
  %v980 = vsel %vm852, %v788, %v916
  %v981 = vsel %vm853, %v789, %v917
  %v982 = vsel %vm854, %v790, %v918
  %v983 = vsel %vm855, %v791, %v919
  %v984 = vsel %vm856, %v792, %v920
  %v985 = vsel %vm857, %v793, %v921
  %986 = vst [vmem:[%s4] sm:$0xff] %v922
  %987 = vst [vmem:[%s4 + $0x8] sm:$0xff] %v923
  %988 = vst [vmem:[%s4 + $0x10] sm:$0xff] %v924
  %989 = vst [vmem:[%s4 + $0x18] sm:$0xff] %v925
  %990 = vst [vmem:[%s4 + $0x20] sm:$0xff] %v926
  %991 = vst [vmem:[%s4 + $0x28] sm:$0xff] %v927
  %992 = vst [vmem:[%s4 + $0x30] sm:$0xff] %v928
  %993 = vst [vmem:[%s4 + $0x38] sm:$0xff] %v929
  %994 = vst [vmem:[%s4 + $0x40] sm:$0xff] %v930
  %995 = vst [vmem:[%s4 + $0x48] sm:$0xff] %v931
  %996 = vst [vmem:[%s4 + $0x50] sm:$0xff] %v932
  %997 = vst [vmem:[%s4 + $0x58] sm:$0xff] %v933
  %998 = vst [vmem:[%s4 + $0x60] sm:$0xff] %v934
  %999 = vst [vmem:[%s4 + $0x68] sm:$0xff] %v935
  %1000 = vst [vmem:[%s4 + $0x70] sm:$0xff] %v936
  %1001 = vst [vmem:[%s4 + $0x78] sm:$0xff] %v937
  %1002 = vst [vmem:[%s4 + $0x80] sm:$0xff] %v938
  %1003 = vst [vmem:[%s4 + $0x88] sm:$0xff] %v939
  %1004 = vst [vmem:[%s4 + $0x90] sm:$0xff] %v940
  %1005 = vst [vmem:[%s4 + $0x98] sm:$0xff] %v941
  %1006 = vst [vmem:[%s4 + $0xa0] sm:$0xff] %v942
  %1007 = vst [vmem:[%s4 + $0xa8] sm:$0xff] %v943
  %1008 = vst [vmem:[%s4 + $0xb0] sm:$0xff] %v944
  %1009 = vst [vmem:[%s4 + $0xb8] sm:$0xff] %v945
  %1010 = vst [vmem:[%s4 + $0xc0] sm:$0xff] %v946
  %1011 = vst [vmem:[%s4 + $0xc8] sm:$0xff] %v947
  %1012 = vst [vmem:[%s4 + $0xd0] sm:$0xff] %v948
  %1013 = vst [vmem:[%s4 + $0xd8] sm:$0xff] %v949
  %1014 = vst [vmem:[%s4 + $0xe0] sm:$0xff] %v950
  %1015 = vst [vmem:[%s4 + $0xe8] sm:$0xff] %v951
  %1016 = vst [vmem:[%s4 + $0xf0] sm:$0xff] %v952
  %1017 = vst [vmem:[%s4 + $0xf8] sm:$0xff] %v953
  %1018 = vst [vmem:[%s4 + $0x100] sm:$0xff] %v954
  %1019 = vst [vmem:[%s4 + $0x108] sm:$0xff] %v955
  %1020 = vst [vmem:[%s4 + $0x110] sm:$0xff] %v956
  %1021 = vst [vmem:[%s4 + $0x118] sm:$0xff] %v957
  %1022 = vst [vmem:[%s4 + $0x120] sm:$0xff] %v958
  %1023 = vst [vmem:[%s4 + $0x128] sm:$0xff] %v959
  %1024 = vst [vmem:[%s4 + $0x130] sm:$0xff] %v960
  %1025 = vst [vmem:[%s4 + $0x138] sm:$0xff] %v961
  %1026 = vst [vmem:[%s4 + $0x140] sm:$0xff] %v962
  %1027 = vst [vmem:[%s4 + $0x148] sm:$0xff] %v963
  %1028 = vst [vmem:[%s4 + $0x150] sm:$0xff] %v964
  %1029 = vst [vmem:[%s4 + $0x158] sm:$0xff] %v965
  %1030 = vst [vmem:[%s4 + $0x160] sm:$0xff] %v966
  %1031 = vst [vmem:[%s4 + $0x168] sm:$0xff] %v967
  %1032 = vst [vmem:[%s4 + $0x170] sm:$0xff] %v968
  %1033 = vst [vmem:[%s4 + $0x178] sm:$0xff] %v969
  %1034 = vst [vmem:[%s4 + $0x180] sm:$0xff] %v970
  %1035 = vst [vmem:[%s4 + $0x188] sm:$0xff] %v971
  %1036 = vst [vmem:[%s4 + $0x190] sm:$0xff] %v972
  %1037 = vst [vmem:[%s4 + $0x198] sm:$0xff] %v973
  %1038 = vst [vmem:[%s4 + $0x1a0] sm:$0xff] %v974
  %1039 = vst [vmem:[%s4 + $0x1a8] sm:$0xff] %v975
  %1040 = vst [vmem:[%s4 + $0x1b0] sm:$0xff] %v976
  %1041 = vst [vmem:[%s4 + $0x1b8] sm:$0xff] %v977
  %1042 = vst [vmem:[%s4 + $0x1c0] sm:$0xff] %v978
  %1043 = vst [vmem:[%s4 + $0x1c8] sm:$0xff] %v979
  %1044 = vst [vmem:[%s4 + $0x1d0] sm:$0xff] %v980
  %1045 = vst [vmem:[%s4 + $0x1d8] sm:$0xff] %v981
  %1046 = vst [vmem:[%s4 + $0x1e0] sm:$0xff] %v982
  %1047 = vst [vmem:[%s4 + $0x1e8] sm:$0xff] %v983
  %1048 = vst [vmem:[%s4 + $0x1f0] sm:$0xff] %v984
  %1049 = vst [vmem:[%s4 + $0x1f8] sm:$0xff] %v985
  // Predicated region
  $region18: #{conv2d_relu_forward_nhwc.3} parent=0 // pred_check
    _
  $region19: #{conv2d_relu_forward_nhwc.3} parent=0 // pred_check_branch
    %1051 = sbr.rel (0) target = $region21
  $region20: #{conv2d_relu_forward_nhwc.3} parent=0 // pred_region
    _
  $region21: #{conv2d_relu_forward_nhwc.3} parent=0 // pred_fallthru
    _
  // Predicated region
  $region22: #{conv2d_relu_forward_nhwc.3} parent=0 // pred_check
    _
  $region23: #{conv2d_relu_forward_nhwc.3} parent=0 // pred_check_branch
    %1053 = sbr.rel (0) target = $region25
  $region24: #{conv2d_relu_forward_nhwc.3} parent=0 // pred_region
    _
  $region25: #{conv2d_relu_forward_nhwc.3} parent=0 // pred_fallthru
    _

// kernel: conv2d_relu_forward_nhwc.2
$region0: #{conv2d_relu_forward_nhwc.2}
  #allocation0 [shape = 'u32[]', space=smem, size = 0x4, offset = 0x4, fixed_abs, tag = 'smem constant byte address 0x4 - core index']
  #allocation1 [shape = 'u32[144,128]{1,0:T(1,128)}', space=vmem, size = 0x12000, scoped, tag = 'internal scratch']
  %s0 = inlined_call_operand.vmem [shape: bf16[512,48], index: 0, kind: input, shape index: {}]
  %s1 = inlined_call_operand.vmem [shape: bf16[48,128], index: 1, kind: input, shape index: {}]
  %s2 = inlined_call_operand.vmem [shape: f32[8,128], index: 2, kind: output, shape index: {}]
  %s3 = sld [smem:[#allocation0]]
  $region18: #{conv2d_relu_forward_nhwc.2} parent=0
    _
  %s5 = ssub.s32 1, %s3
  %s6 = scalar_select 0, %s5, %s3
  // Predicated region
  $region2: #{conv2d_relu_forward_nhwc.2} parent=0 // pred_check
    _
  $region3: #{conv2d_relu_forward_nhwc.2} parent=0 // pred_check_branch
    %8 = sbr.rel (0) target = $region5
  $region4: #{conv2d_relu_forward_nhwc.2} parent=0 // pred_region
    _
  $region5: #{conv2d_relu_forward_nhwc.2} parent=0 // pred_fallthru
    _
  // Predicated region
  $region6: #{conv2d_relu_forward_nhwc.2} parent=0 // pred_check
    _
  $region7: #{conv2d_relu_forward_nhwc.2} parent=0 // pred_check_branch
    %10 = sbr.rel (0) target = $region9
  $region8: #{conv2d_relu_forward_nhwc.2} parent=0 // pred_region
    _
  $region9: #{conv2d_relu_forward_nhwc.2} parent=0 // pred_fallthru
    _
  %v12 = vld [vmem:[%s0] sm:$0xf]
  %v13 = vld [vmem:[%s0 + $0x4] sm:$0xf]
  %v14 = vld [vmem:[%s0 + $0x8] sm:$0xf]
  %v15 = vld [vmem:[%s0 + $0xc] sm:$0xf]
  %v16 = vld [vmem:[%s0 + $0x10] sm:$0xf]
  %v17 = vld [vmem:[%s0 + $0x14] sm:$0xf]
  %v18 = vld [vmem:[%s0 + $0x18] sm:$0xf]
  %v19 = vld [vmem:[%s0 + $0x1c] sm:$0xf]
  %v20 = vld [vmem:[%s0 + $0x20] sm:$0xf]
  %v21 = vld [vmem:[%s0 + $0x24] sm:$0xf]
  %v22 = vld [vmem:[%s0 + $0x28] sm:$0xf]
  %v23 = vld [vmem:[%s0 + $0x2c] sm:$0xf]
  %v24 = vld [vmem:[%s0 + $0x30] sm:$0xf]
  %v25 = vld [vmem:[%s0 + $0x34] sm:$0xf]
  %v26 = vld [vmem:[%s0 + $0x38] sm:$0xf]
  %v27 = vld [vmem:[%s0 + $0x3c] sm:$0xf]
  %v28 = vld [vmem:[%s0 + $0x40] sm:$0xf]
  %v29 = vld [vmem:[%s0 + $0x44] sm:$0xf]
  %v30 = vld [vmem:[%s0 + $0x48] sm:$0xf]
  %v31 = vld [vmem:[%s0 + $0x4c] sm:$0xf]
  %v32 = vld [vmem:[%s0 + $0x50] sm:$0xf]
  %v33 = vld [vmem:[%s0 + $0x54] sm:$0xf]
  %v34 = vld [vmem:[%s0 + $0x58] sm:$0xf]
  %v35 = vld [vmem:[%s0 + $0x5c] sm:$0xf]
  %v36 = vld [vmem:[%s0 + $0x60] sm:$0xf]
  %v37 = vld [vmem:[%s0 + $0x64] sm:$0xf]
  %v38 = vld [vmem:[%s0 + $0x68] sm:$0xf]
  %v39 = vld [vmem:[%s0 + $0x6c] sm:$0xf]
  %v40 = vld [vmem:[%s0 + $0x70] sm:$0xf]
  %v41 = vld [vmem:[%s0 + $0x74] sm:$0xf]
  %v42 = vld [vmem:[%s0 + $0x78] sm:$0xf]
  %v43 = vld [vmem:[%s0 + $0x7c] sm:$0xf]
  %v44 = vld [vmem:[%s0 + $0x80] sm:$0xf]
  %v45 = vld [vmem:[%s0 + $0x84] sm:$0xf]
  %v46 = vld [vmem:[%s0 + $0x88] sm:$0xf]
  %v47 = vld [vmem:[%s0 + $0x8c] sm:$0xf]
  %v48 = vld [vmem:[%s0 + $0x90] sm:$0xf]
  %v49 = vld [vmem:[%s0 + $0x94] sm:$0xf]
  %v50 = vld [vmem:[%s0 + $0x98] sm:$0xf]
  %v51 = vld [vmem:[%s0 + $0x9c] sm:$0xf]
  %v52 = vld [vmem:[%s0 + $0xa0] sm:$0xf]
  %v53 = vld [vmem:[%s0 + $0xa4] sm:$0xf]
  %v54 = vld [vmem:[%s0 + $0xa8] sm:$0xf]
  %v55 = vld [vmem:[%s0 + $0xac] sm:$0xf]
  %v56 = vld [vmem:[%s0 + $0xb0] sm:$0xf]
  %v57 = vld [vmem:[%s0 + $0xb4] sm:$0xf]
  %v58 = vld [vmem:[%s0 + $0xb8] sm:$0xf]
  %v59 = vld [vmem:[%s0 + $0xbc] sm:$0xf]
  %v60 = vld [vmem:[%s0 + $0xc0] sm:$0xf]
  %v61 = vld [vmem:[%s0 + $0xc4] sm:$0xf]
  %v62 = vld [vmem:[%s0 + $0xc8] sm:$0xf]
  %v63 = vld [vmem:[%s0 + $0xcc] sm:$0xf]
  %v64 = vld [vmem:[%s0 + $0xd0] sm:$0xf]
  %v65 = vld [vmem:[%s0 + $0xd4] sm:$0xf]
  %v66 = vld [vmem:[%s0 + $0xd8] sm:$0xf]
  %v67 = vld [vmem:[%s0 + $0xdc] sm:$0xf]
  %v68 = vld [vmem:[%s0 + $0xe0] sm:$0xf]
  %v69 = vld [vmem:[%s0 + $0xe4] sm:$0xf]
  %v70 = vld [vmem:[%s0 + $0xe8] sm:$0xf]
  %v71 = vld [vmem:[%s0 + $0xec] sm:$0xf]
  %v72 = vld [vmem:[%s0 + $0xf0] sm:$0xf]
  %v73 = vld [vmem:[%s0 + $0xf4] sm:$0xf]
  %v74 = vld [vmem:[%s0 + $0xf8] sm:$0xf]
  %v75 = vld [vmem:[%s0 + $0xfc] sm:$0xf]
  %v76 = vld [vmem:[%s1] sm:$0xf]
  %v77 = vld [vmem:[%s1 + $0x4] sm:$0xf]
  %v78 = vld [vmem:[%s1 + $0x8] sm:$0xf]
  %v79 = vld [vmem:[%s1 + $0xc] sm:$0xf]
  %v80 = vld [vmem:[%s1 + $0x10] sm:$0xf]
  %v81 = vld [vmem:[%s1 + $0x14] sm:$0xf]
  %v146 = vunpack.c.l.b16 %v12
  %v147 = vunpack.c.l.b16 %v13
  %v148 = vunpack.c.l.b16 %v14
  %v149 = vunpack.c.l.b16 %v15
  %v150 = vunpack.c.l.b16 %v16
  %v151 = vunpack.c.l.b16 %v17
  %v152 = vunpack.c.l.b16 %v18
  %v153 = vunpack.c.l.b16 %v19
  %v154 = vunpack.c.l.b16 %v20
  %v155 = vunpack.c.l.b16 %v21
  %v156 = vunpack.c.l.b16 %v22
  %v157 = vunpack.c.l.b16 %v23
  %v158 = vunpack.c.l.b16 %v24
  %v159 = vunpack.c.l.b16 %v25
  %v160 = vunpack.c.l.b16 %v26
  %v161 = vunpack.c.l.b16 %v27
  %v162 = vunpack.c.l.b16 %v28
  %v163 = vunpack.c.l.b16 %v29
  %v164 = vunpack.c.l.b16 %v30
  %v165 = vunpack.c.l.b16 %v31
  %v166 = vunpack.c.l.b16 %v32
  %v167 = vunpack.c.l.b16 %v33
  %v168 = vunpack.c.l.b16 %v34
  %v169 = vunpack.c.l.b16 %v35
  %v170 = vunpack.c.l.b16 %v36
  %v171 = vunpack.c.l.b16 %v37
  %v172 = vunpack.c.l.b16 %v38
  %v173 = vunpack.c.l.b16 %v39
  %v174 = vunpack.c.l.b16 %v40
  %v175 = vunpack.c.l.b16 %v41
  %v176 = vunpack.c.l.b16 %v42
  %v177 = vunpack.c.l.b16 %v43
  %v178 = vunpack.c.l.b16 %v44
  %v179 = vunpack.c.l.b16 %v45
  %v180 = vunpack.c.l.b16 %v46
  %v181 = vunpack.c.l.b16 %v47
  %v182 = vunpack.c.l.b16 %v48
  %v183 = vunpack.c.l.b16 %v49
  %v184 = vunpack.c.l.b16 %v50
  %v185 = vunpack.c.l.b16 %v51
  %v186 = vunpack.c.l.b16 %v52
  %v187 = vunpack.c.l.b16 %v53
  %v188 = vunpack.c.l.b16 %v54
  %v189 = vunpack.c.l.b16 %v55
  %v190 = vunpack.c.l.b16 %v56
  %v191 = vunpack.c.l.b16 %v57
  %v192 = vunpack.c.l.b16 %v58
  %v193 = vunpack.c.l.b16 %v59
  %v194 = vunpack.c.l.b16 %v60
  %v195 = vunpack.c.l.b16 %v61
  %v196 = vunpack.c.l.b16 %v62
  %v197 = vunpack.c.l.b16 %v63
  %v198 = vunpack.c.l.b16 %v64
  %v199 = vunpack.c.l.b16 %v65
  %v200 = vunpack.c.l.b16 %v66
  %v201 = vunpack.c.l.b16 %v67
  %v202 = vunpack.c.l.b16 %v68
  %v203 = vunpack.c.l.b16 %v69
  %v204 = vunpack.c.l.b16 %v70
  %v205 = vunpack.c.l.b16 %v71
  %v206 = vunpack.c.l.b16 %v72
  %v207 = vunpack.c.l.b16 %v73
  %v208 = vunpack.c.l.b16 %v74
  %v209 = vunpack.c.l.b16 %v75
  %v210 = vpack.c.b16 %v147, %v146
  %v211 = vpack.c.b16 %v149, %v148
  %v212 = vpack.c.b16 %v151, %v150
  %v213 = vpack.c.b16 %v153, %v152
  %v214 = vpack.c.b16 %v155, %v154
  %v215 = vpack.c.b16 %v157, %v156
  %v216 = vpack.c.b16 %v159, %v158
  %v217 = vpack.c.b16 %v161, %v160
  %v218 = vpack.c.b16 %v163, %v162
  %v219 = vpack.c.b16 %v165, %v164
  %v220 = vpack.c.b16 %v167, %v166
  %v221 = vpack.c.b16 %v169, %v168
  %v222 = vpack.c.b16 %v171, %v170
  %v223 = vpack.c.b16 %v173, %v172
  %v224 = vpack.c.b16 %v175, %v174
  %v225 = vpack.c.b16 %v177, %v176
  %v226 = vpack.c.b16 %v179, %v178
  %v227 = vpack.c.b16 %v181, %v180
  %v228 = vpack.c.b16 %v183, %v182
  %v229 = vpack.c.b16 %v185, %v184
  %v230 = vpack.c.b16 %v187, %v186
  %v231 = vpack.c.b16 %v189, %v188
  %v232 = vpack.c.b16 %v191, %v190
  %v233 = vpack.c.b16 %v193, %v192
  %v234 = vpack.c.b16 %v195, %v194
  %v235 = vpack.c.b16 %v197, %v196
  %v236 = vpack.c.b16 %v199, %v198
  %v237 = vpack.c.b16 %v201, %v200
  %v238 = vpack.c.b16 %v203, %v202
  %v239 = vpack.c.b16 %v205, %v204
  %v240 = vpack.c.b16 %v207, %v206
  %v241 = vpack.c.b16 %v209, %v208
  %v248 = vunpack.c.l.b16 %v76
  %v249 = vunpack.c.l.b16 %v77
  %v250 = vunpack.c.l.b16 %v78
  %v251 = vunpack.c.l.b16 %v79
  %v252 = vunpack.c.l.b16 %v80
  %v253 = vunpack.c.l.b16 %v81
  %v254 = vpack.c.b16 %v249, %v248
  %v255 = vpack.c.b16 %v251, %v250
  %v256 = vpack.c.b16 %v253, %v252
  %vm260 = vcmask 392192
  %v262 = vsel %vm260, %v210, 0
  %v265 = vsel %vm260, %v211, 0
  %v268 = vsel %vm260, %v212, 0
  %v271 = vsel %vm260, %v213, 0
  %v274 = vsel %vm260, %v214, 0
  %v277 = vsel %vm260, %v215, 0
  %v280 = vsel %vm260, %v216, 0
  %v283 = vsel %vm260, %v217, 0
  %v286 = vsel %vm260, %v218, 0
  %v289 = vsel %vm260, %v219, 0
  %v292 = vsel %vm260, %v220, 0
  %v295 = vsel %vm260, %v221, 0
  %v298 = vsel %vm260, %v222, 0
  %v301 = vsel %vm260, %v223, 0
  %v304 = vsel %vm260, %v224, 0
  %v307 = vsel %vm260, %v225, 0
  %v310 = vsel %vm260, %v226, 0
  %v313 = vsel %vm260, %v227, 0
  %v316 = vsel %vm260, %v228, 0
  %v319 = vsel %vm260, %v229, 0
  %v322 = vsel %vm260, %v230, 0
  %v325 = vsel %vm260, %v231, 0
  %v328 = vsel %vm260, %v232, 0
  %v331 = vsel %vm260, %v233, 0
  %v334 = vsel %vm260, %v234, 0
  %v337 = vsel %vm260, %v235, 0
  %v340 = vsel %vm260, %v236, 0
  %v343 = vsel %vm260, %v237, 0
  %v346 = vsel %vm260, %v238, 0
  %v349 = vsel %vm260, %v239, 0
  %v352 = vsel %vm260, %v240, 0
  %v355 = vsel %vm260, %v241, 0
  %357 = vmatprep.subr.bf16.mxu0 0
  %358 = vmatpush1.bf16.msra.mxu0 %v254
  %359 = vmatprep.subr.bf16.mxu0 0
  %360 = vmatpush1.bf16.msra.mxu0 %v255
  %361 = vmatprep.subr.bf16.mxu0 0
  %362 = vmatpush1.bf16.msra.mxu0 %v256
  %363 = vmatprep.subr.bf16.mxu0 0
  %364 = vmatpush1.bf16.msra.mxu0 0
  %365 = vmatprep.subr.bf16.mxu0 0
  %366 = vmatpush1.bf16.msra.mxu0 0
  %367 = vmatprep.subr.bf16.mxu0 0
  %368 = vmatpush1.bf16.msra.mxu0 0
  %369 = vmatprep.subr.bf16.mxu0 0
  %370 = vmatpush1.bf16.msra.mxu0 0
  %371 = vmatprep.subr.bf16.mxu0 0
  %372 = vmatpush1.bf16.msra.mxu0 0
  %373 = vmatprep.subr.bf16.mxu0 0
  %374 = vmatpush1.bf16.msra.mxu0 0
  %375 = vmatprep.subr.bf16.mxu0 0
  %376 = vmatpush1.bf16.msra.mxu0 0
  %377 = vmatprep.subr.bf16.mxu0 0
  %378 = vmatpush1.bf16.msra.mxu0 0
  %379 = vmatprep.subr.bf16.mxu0 0
  %380 = vmatpush1.bf16.msra.mxu0 0
  %381 = vmatprep.subr.bf16.mxu0 0
  %382 = vmatpush1.bf16.msra.mxu0 0
  %383 = vmatprep.subr.bf16.mxu0 0
  %384 = vmatpush1.bf16.msra.mxu0 0
  %385 = vmatprep.subr.bf16.mxu0 0
  %386 = vmatpush1.bf16.msra.mxu0 0
  %387 = vmatprep.subr.bf16.mxu0 0
  %388 = vmatpush1.bf16.msra.mxu0 0
  %389 = vmatprep.mubr.bf16.mxu0 0
  %390 = vmatmul.mubr.bf16.gmra.mrb[0].mxu0 %v262
  %v391 = vpop.f32.mrb[0].mxu0
  %v392 = vadd.f32 0.0, %v391
  %v393 = vpop.f32.mrb[0].mxu0
  %v394 = vpop.f32.mrb[0].mxu0
  %v395 = vadd.f32 0.0, %v394
  %v396 = vpop.f32.mrb[0].mxu0
  %397 = vmatprep.mubr.bf16.mxu0 0
  %398 = vmatmul.mubr.bf16.gmra.mrb[0].mxu0 %v265
  %v399 = vpop.f32.mrb[0].mxu0
  %v400 = vadd.f32 0.0, %v399
  %v401 = vpop.f32.mrb[0].mxu0
  %v402 = vpop.f32.mrb[0].mxu0
  %v403 = vadd.f32 0.0, %v402
  %v404 = vpop.f32.mrb[0].mxu0
  %405 = vmatprep.mubr.bf16.mxu0 0
  %406 = vmatmul.mubr.bf16.gmra.mrb[0].mxu0 %v268
  %v407 = vpop.f32.mrb[0].mxu0
  %v408 = vadd.f32 0.0, %v407
  %v409 = vpop.f32.mrb[0].mxu0
  %v410 = vpop.f32.mrb[0].mxu0
  %v411 = vadd.f32 0.0, %v410
  %v412 = vpop.f32.mrb[0].mxu0
  %413 = vmatprep.mubr.bf16.mxu0 0
  %414 = vmatmul.mubr.bf16.gmra.mrb[0].mxu0 %v271
  %v415 = vpop.f32.mrb[0].mxu0
  %v416 = vadd.f32 0.0, %v415
  %v417 = vpop.f32.mrb[0].mxu0
  %v418 = vpop.f32.mrb[0].mxu0
  %v419 = vadd.f32 0.0, %v418
  %v420 = vpop.f32.mrb[0].mxu0
  %421 = vmatprep.mubr.bf16.mxu0 0
  %422 = vmatmul.mubr.bf16.gmra.mrb[0].mxu0 %v274
  %v423 = vpop.f32.mrb[0].mxu0
  %v424 = vadd.f32 0.0, %v423
  %v425 = vpop.f32.mrb[0].mxu0
  %v426 = vpop.f32.mrb[0].mxu0
  %v427 = vadd.f32 0.0, %v426
  %v428 = vpop.f32.mrb[0].mxu0
  %429 = vmatprep.mubr.bf16.mxu0 0
  %430 = vmatmul.mubr.bf16.gmra.mrb[0].mxu0 %v277
  %v431 = vpop.f32.mrb[0].mxu0
  %v432 = vadd.f32 0.0, %v431
  %v433 = vpop.f32.mrb[0].mxu0
  %v434 = vpop.f32.mrb[0].mxu0
  %v435 = vadd.f32 0.0, %v434
  %v436 = vpop.f32.mrb[0].mxu0
  %437 = vmatprep.mubr.bf16.mxu0 0
  %438 = vmatmul.mubr.bf16.gmra.mrb[0].mxu0 %v280
  %v439 = vpop.f32.mrb[0].mxu0
  %v440 = vadd.f32 0.0, %v439
  %v441 = vpop.f32.mrb[0].mxu0
  %v442 = vpop.f32.mrb[0].mxu0
  %v443 = vadd.f32 0.0, %v442
  %v444 = vpop.f32.mrb[0].mxu0
  %445 = vmatprep.mubr.bf16.mxu0 0
  %446 = vmatmul.mubr.bf16.gmra.mrb[0].mxu0 %v283
  %v447 = vpop.f32.mrb[0].mxu0
  %v448 = vadd.f32 0.0, %v447
  %v449 = vpop.f32.mrb[0].mxu0
  %v450 = vpop.f32.mrb[0].mxu0
  %v451 = vadd.f32 0.0, %v450
  %v452 = vpop.f32.mrb[0].mxu0
  %453 = vmatprep.mubr.bf16.mxu0 0
  %454 = vmatmul.mubr.bf16.gmra.mrb[0].mxu0 %v286
  %v455 = vpop.f32.mrb[0].mxu0
  %v456 = vadd.f32 0.0, %v455
  %v457 = vpop.f32.mrb[0].mxu0
  %v458 = vpop.f32.mrb[0].mxu0
  %v459 = vadd.f32 0.0, %v458
  %v460 = vpop.f32.mrb[0].mxu0
  %461 = vmatprep.mubr.bf16.mxu0 0
  %462 = vmatmul.mubr.bf16.gmra.mrb[0].mxu0 %v289
  %v463 = vpop.f32.mrb[0].mxu0
  %v464 = vadd.f32 0.0, %v463
  %v465 = vpop.f32.mrb[0].mxu0
  %v466 = vpop.f32.mrb[0].mxu0
  %v467 = vadd.f32 0.0, %v466
  %v468 = vpop.f32.mrb[0].mxu0
  %469 = vmatprep.mubr.bf16.mxu0 0
  %470 = vmatmul.mubr.bf16.gmra.mrb[0].mxu0 %v292
  %v471 = vpop.f32.mrb[0].mxu0
  %v472 = vadd.f32 0.0, %v471
  %v473 = vpop.f32.mrb[0].mxu0
  %v474 = vpop.f32.mrb[0].mxu0
  %v475 = vadd.f32 0.0, %v474
  %v476 = vpop.f32.mrb[0].mxu0
  %477 = vmatprep.mubr.bf16.mxu0 0
  %478 = vmatmul.mubr.bf16.gmra.mrb[0].mxu0 %v295
  %v479 = vpop.f32.mrb[0].mxu0
  %v480 = vadd.f32 0.0, %v479
  %v481 = vpop.f32.mrb[0].mxu0
  %v482 = vpop.f32.mrb[0].mxu0
  %v483 = vadd.f32 0.0, %v482
  %v484 = vpop.f32.mrb[0].mxu0
  %485 = vmatprep.mubr.bf16.mxu0 0
  %486 = vmatmul.mubr.bf16.gmra.mrb[0].mxu0 %v298
  %v487 = vpop.f32.mrb[0].mxu0
  %v488 = vadd.f32 0.0, %v487
  %v489 = vpop.f32.mrb[0].mxu0
  %v490 = vpop.f32.mrb[0].mxu0
  %v491 = vadd.f32 0.0, %v490
  %v492 = vpop.f32.mrb[0].mxu0
  %493 = vmatprep.mubr.bf16.mxu0 0
  %494 = vmatmul.mubr.bf16.gmra.mrb[0].mxu0 %v301
  %v495 = vpop.f32.mrb[0].mxu0
  %v496 = vadd.f32 0.0, %v495
  %v497 = vpop.f32.mrb[0].mxu0
  %v498 = vpop.f32.mrb[0].mxu0
  %v499 = vadd.f32 0.0, %v498
  %v500 = vpop.f32.mrb[0].mxu0
  %501 = vmatprep.mubr.bf16.mxu0 0
  %502 = vmatmul.mubr.bf16.gmra.mrb[0].mxu0 %v304
  %v503 = vpop.f32.mrb[0].mxu0
  %v504 = vadd.f32 0.0, %v503
  %v505 = vpop.f32.mrb[0].mxu0
  %v506 = vpop.f32.mrb[0].mxu0
  %v507 = vadd.f32 0.0, %v506
  %v508 = vpop.f32.mrb[0].mxu0
  %509 = vmatprep.mubr.bf16.mxu0 0
  %510 = vmatmul.mubr.bf16.gmra.mrb[0].mxu0 %v307
  %v511 = vpop.f32.mrb[0].mxu0
  %v512 = vadd.f32 0.0, %v511
  %v513 = vpop.f32.mrb[0].mxu0
  %v514 = vpop.f32.mrb[0].mxu0
  %v515 = vadd.f32 0.0, %v514
  %v516 = vpop.f32.mrb[0].mxu0
  %517 = vmatprep.mubr.bf16.mxu0 0
  %518 = vmatmul.mubr.bf16.gmra.mrb[0].mxu0 %v310
  %v519 = vpop.f32.mrb[0].mxu0
  %v520 = vadd.f32 0.0, %v519
  %v521 = vpop.f32.mrb[0].mxu0
  %v522 = vpop.f32.mrb[0].mxu0
  %v523 = vadd.f32 0.0, %v522
  %v524 = vpop.f32.mrb[0].mxu0
  %525 = vmatprep.mubr.bf16.mxu0 0
  %526 = vmatmul.mubr.bf16.gmra.mrb[0].mxu0 %v313
  %v527 = vpop.f32.mrb[0].mxu0
  %v528 = vadd.f32 0.0, %v527
  %v529 = vpop.f32.mrb[0].mxu0
  %v530 = vpop.f32.mrb[0].mxu0
  %v531 = vadd.f32 0.0, %v530
  %v532 = vpop.f32.mrb[0].mxu0
  %533 = vmatprep.mubr.bf16.mxu0 0
  %534 = vmatmul.mubr.bf16.gmra.mrb[0].mxu0 %v316
  %v535 = vpop.f32.mrb[0].mxu0
  %v536 = vadd.f32 0.0, %v535
  %v537 = vpop.f32.mrb[0].mxu0
  %v538 = vpop.f32.mrb[0].mxu0
  %v539 = vadd.f32 0.0, %v538
  %v540 = vpop.f32.mrb[0].mxu0
  %541 = vmatprep.mubr.bf16.mxu0 0
  %542 = vmatmul.mubr.bf16.gmra.mrb[0].mxu0 %v319
  %v543 = vpop.f32.mrb[0].mxu0
  %v544 = vadd.f32 0.0, %v543
  %v545 = vpop.f32.mrb[0].mxu0
  %v546 = vpop.f32.mrb[0].mxu0
  %v547 = vadd.f32 0.0, %v546
  %v548 = vpop.f32.mrb[0].mxu0
  %549 = vmatprep.mubr.bf16.mxu0 0
  %550 = vmatmul.mubr.bf16.gmra.mrb[0].mxu0 %v322
  %v551 = vpop.f32.mrb[0].mxu0
  %v552 = vadd.f32 0.0, %v551
  %v553 = vpop.f32.mrb[0].mxu0
  %v554 = vpop.f32.mrb[0].mxu0
  %v555 = vadd.f32 0.0, %v554
  %v556 = vpop.f32.mrb[0].mxu0
  %557 = vmatprep.mubr.bf16.mxu0 0
  %558 = vmatmul.mubr.bf16.gmra.mrb[0].mxu0 %v325
  %v559 = vpop.f32.mrb[0].mxu0
  %v560 = vadd.f32 0.0, %v559
  %v561 = vpop.f32.mrb[0].mxu0
  %v562 = vpop.f32.mrb[0].mxu0
  %v563 = vadd.f32 0.0, %v562
  %v564 = vpop.f32.mrb[0].mxu0
  %565 = vmatprep.mubr.bf16.mxu0 0
  %566 = vmatmul.mubr.bf16.gmra.mrb[0].mxu0 %v328
  %v567 = vpop.f32.mrb[0].mxu0
  %v568 = vadd.f32 0.0, %v567
  %v569 = vpop.f32.mrb[0].mxu0
  %v570 = vpop.f32.mrb[0].mxu0
  %v571 = vadd.f32 0.0, %v570
  %v572 = vpop.f32.mrb[0].mxu0
  %573 = vmatprep.mubr.bf16.mxu0 0
  %574 = vmatmul.mubr.bf16.gmra.mrb[0].mxu0 %v331
  %v575 = vpop.f32.mrb[0].mxu0
  %v576 = vadd.f32 0.0, %v575
  %v577 = vpop.f32.mrb[0].mxu0
  %v578 = vpop.f32.mrb[0].mxu0
  %v579 = vadd.f32 0.0, %v578
  %v580 = vpop.f32.mrb[0].mxu0
  %581 = vmatprep.mubr.bf16.mxu0 0
  %582 = vmatmul.mubr.bf16.gmra.mrb[0].mxu0 %v334
  %v583 = vpop.f32.mrb[0].mxu0
  %v584 = vadd.f32 0.0, %v583
  %v585 = vpop.f32.mrb[0].mxu0
  %v586 = vpop.f32.mrb[0].mxu0
  %v587 = vadd.f32 0.0, %v586
  %v588 = vpop.f32.mrb[0].mxu0
  %589 = vmatprep.mubr.bf16.mxu0 0
  %590 = vmatmul.mubr.bf16.gmra.mrb[0].mxu0 %v337
  %v591 = vpop.f32.mrb[0].mxu0
  %v592 = vadd.f32 0.0, %v591
  %v593 = vpop.f32.mrb[0].mxu0
  %v594 = vpop.f32.mrb[0].mxu0
  %v595 = vadd.f32 0.0, %v594
  %v596 = vpop.f32.mrb[0].mxu0
  %597 = vmatprep.mubr.bf16.mxu0 0
  %598 = vmatmul.mubr.bf16.gmra.mrb[0].mxu0 %v340
  %v599 = vpop.f32.mrb[0].mxu0
  %v600 = vadd.f32 0.0, %v599
  %v601 = vpop.f32.mrb[0].mxu0
  %v602 = vpop.f32.mrb[0].mxu0
  %v603 = vadd.f32 0.0, %v602
  %v604 = vpop.f32.mrb[0].mxu0
  %605 = vmatprep.mubr.bf16.mxu0 0
  %606 = vmatmul.mubr.bf16.gmra.mrb[0].mxu0 %v343
  %v607 = vpop.f32.mrb[0].mxu0
  %v608 = vadd.f32 0.0, %v607
  %v609 = vpop.f32.mrb[0].mxu0
  %v610 = vpop.f32.mrb[0].mxu0
  %v611 = vadd.f32 0.0, %v610
  %v612 = vpop.f32.mrb[0].mxu0
  %613 = vmatprep.mubr.bf16.mxu0 0
  %614 = vmatmul.mubr.bf16.gmra.mrb[0].mxu0 %v346
  %v615 = vpop.f32.mrb[0].mxu0
  %v616 = vadd.f32 0.0, %v615
  %v617 = vpop.f32.mrb[0].mxu0
  %v618 = vpop.f32.mrb[0].mxu0
  %v619 = vadd.f32 0.0, %v618
  %v620 = vpop.f32.mrb[0].mxu0
  %621 = vmatprep.mubr.bf16.mxu0 0
  %622 = vmatmul.mubr.bf16.gmra.mrb[0].mxu0 %v349
  %v623 = vpop.f32.mrb[0].mxu0
  %v624 = vadd.f32 0.0, %v623
  %v625 = vpop.f32.mrb[0].mxu0
  %v626 = vpop.f32.mrb[0].mxu0
  %v627 = vadd.f32 0.0, %v626
  %v628 = vpop.f32.mrb[0].mxu0
  %629 = vmatprep.mubr.bf16.mxu0 0
  %630 = vmatmul.mubr.bf16.gmra.mrb[0].mxu0 %v352
  %v631 = vpop.f32.mrb[0].mxu0
  %v632 = vadd.f32 0.0, %v631
  %v633 = vpop.f32.mrb[0].mxu0
  %v634 = vpop.f32.mrb[0].mxu0
  %v635 = vadd.f32 0.0, %v634
  %v636 = vpop.f32.mrb[0].mxu0
  %637 = vmatprep.mubr.bf16.mxu0 0
  %638 = vmatmul.mubr.bf16.gmra.mrb[0].mxu0 %v355
  %v639 = vpop.f32.mrb[0].mxu0
  %v640 = vadd.f32 0.0, %v639
  %v641 = vpop.f32.mrb[0].mxu0
  %v642 = vpop.f32.mrb[0].mxu0
  %v643 = vadd.f32 0.0, %v642
  %v644 = vpop.f32.mrb[0].mxu0
  %645 = vdwg.mxu0
  %v646 = vadd.f32 %v392, %v395
  %v647 = vadd.f32 %v646, %v400
  %v648 = vadd.f32 %v647, %v403
  %v649 = vadd.f32 %v648, %v408
  %v650 = vadd.f32 %v649, %v411
  %v651 = vadd.f32 %v650, %v416
  %v652 = vadd.f32 %v651, %v419
  %v653 = vadd.f32 %v652, %v424
  %v654 = vadd.f32 %v653, %v427
  %v655 = vadd.f32 %v654, %v432
  %v656 = vadd.f32 %v655, %v435
  %v657 = vadd.f32 %v656, %v440
  %v658 = vadd.f32 %v657, %v443
  %v659 = vadd.f32 %v658, %v448
  %v660 = vadd.f32 %v659, %v451
  %v661 = vadd.f32 %v660, %v456
  %v662 = vadd.f32 %v661, %v459
  %v663 = vadd.f32 %v662, %v464
  %v664 = vadd.f32 %v663, %v467
  %v665 = vadd.f32 %v664, %v472
  %v666 = vadd.f32 %v665, %v475
  %v667 = vadd.f32 %v666, %v480
  %v668 = vadd.f32 %v667, %v483
  %v669 = vadd.f32 %v668, %v488
  %v670 = vadd.f32 %v669, %v491
  %v671 = vadd.f32 %v670, %v496
  %v672 = vadd.f32 %v671, %v499
  %v673 = vadd.f32 %v672, %v504
  %v674 = vadd.f32 %v673, %v507
  %v675 = vadd.f32 %v674, %v512
  %v676 = vadd.f32 %v675, %v515
  %v677 = vadd.f32 %v676, %v520
  %v678 = vadd.f32 %v677, %v523
  %v679 = vadd.f32 %v678, %v528
  %v680 = vadd.f32 %v679, %v531
  %v681 = vadd.f32 %v680, %v536
  %v682 = vadd.f32 %v681, %v539
  %v683 = vadd.f32 %v682, %v544
  %v684 = vadd.f32 %v683, %v547
  %v685 = vadd.f32 %v684, %v552
  %v686 = vadd.f32 %v685, %v555
  %v687 = vadd.f32 %v686, %v560
  %v688 = vadd.f32 %v687, %v563
  %v689 = vadd.f32 %v688, %v568
  %v690 = vadd.f32 %v689, %v571
  %v691 = vadd.f32 %v690, %v576
  %v692 = vadd.f32 %v691, %v579
  %v693 = vadd.f32 %v692, %v584
  %v694 = vadd.f32 %v693, %v587
  %v695 = vadd.f32 %v694, %v592
  %v696 = vadd.f32 %v695, %v595
  %v697 = vadd.f32 %v696, %v600
  %v698 = vadd.f32 %v697, %v603
  %v699 = vadd.f32 %v698, %v608
  %v700 = vadd.f32 %v699, %v611
  %v701 = vadd.f32 %v700, %v616
  %v702 = vadd.f32 %v701, %v619
  %v703 = vadd.f32 %v702, %v624
  %v704 = vadd.f32 %v703, %v627
  %v705 = vadd.f32 %v704, %v632
  %v706 = vadd.f32 %v705, %v635
  %v707 = vadd.f32 %v706, %v640
  %v708 = vadd.f32 %v707, %v643
  %v709 = vrot.slane %v708, 4
  %v710 = vadd.f32 %v708, %v709
  %v711 = vrot.slane %v710, 2
  %v712 = vadd.f32 %v710, %v711
  %v713 = vrot.slane %v712, 1
  %v714 = vadd.f32 %v712, %v713
  %v715 = vmul.f32 %v392, %v392
  %v716 = vmul.f32 %v395, %v395
  %v717 = vmul.f32 %v400, %v400
  %v718 = vmul.f32 %v403, %v403
  %v719 = vmul.f32 %v408, %v408
  %v720 = vmul.f32 %v411, %v411
  %v721 = vmul.f32 %v416, %v416
  %v722 = vmul.f32 %v419, %v419
  %v723 = vmul.f32 %v424, %v424
  %v724 = vmul.f32 %v427, %v427
  %v725 = vmul.f32 %v432, %v432
  %v726 = vmul.f32 %v435, %v435
  %v727 = vmul.f32 %v440, %v440
  %v728 = vmul.f32 %v443, %v443
  %v729 = vmul.f32 %v448, %v448
  %v730 = vmul.f32 %v451, %v451
  %v731 = vmul.f32 %v456, %v456
  %v732 = vmul.f32 %v459, %v459
  %v733 = vmul.f32 %v464, %v464
  %v734 = vmul.f32 %v467, %v467
  %v735 = vmul.f32 %v472, %v472
  %v736 = vmul.f32 %v475, %v475
  %v737 = vmul.f32 %v480, %v480
  %v738 = vmul.f32 %v483, %v483
  %v739 = vmul.f32 %v488, %v488
  %v740 = vmul.f32 %v491, %v491
  %v741 = vmul.f32 %v496, %v496
  %v742 = vmul.f32 %v499, %v499
  %v743 = vmul.f32 %v504, %v504
  %v744 = vmul.f32 %v507, %v507
  %v745 = vmul.f32 %v512, %v512
  %v746 = vmul.f32 %v515, %v515
  %v747 = vmul.f32 %v520, %v520
  %v748 = vmul.f32 %v523, %v523
  %v749 = vmul.f32 %v528, %v528
  %v750 = vmul.f32 %v531, %v531
  %v751 = vmul.f32 %v536, %v536
  %v752 = vmul.f32 %v539, %v539
  %v753 = vmul.f32 %v544, %v544
  %v754 = vmul.f32 %v547, %v547
  %v755 = vmul.f32 %v552, %v552
  %v756 = vmul.f32 %v555, %v555
  %v757 = vmul.f32 %v560, %v560
  %v758 = vmul.f32 %v563, %v563
  %v759 = vmul.f32 %v568, %v568
  %v760 = vmul.f32 %v571, %v571
  %v761 = vmul.f32 %v576, %v576
  %v762 = vmul.f32 %v579, %v579
  %v763 = vmul.f32 %v584, %v584
  %v764 = vmul.f32 %v587, %v587
  %v765 = vmul.f32 %v592, %v592
  %v766 = vmul.f32 %v595, %v595
  %v767 = vmul.f32 %v600, %v600
  %v768 = vmul.f32 %v603, %v603
  %v769 = vmul.f32 %v608, %v608
  %v770 = vmul.f32 %v611, %v611
  %v771 = vmul.f32 %v616, %v616
  %v772 = vmul.f32 %v619, %v619
  %v773 = vmul.f32 %v624, %v624
  %v774 = vmul.f32 %v627, %v627
  %v775 = vmul.f32 %v632, %v632
  %v776 = vmul.f32 %v635, %v635
  %v777 = vmul.f32 %v640, %v640
  %v778 = vmul.f32 %v643, %v643
  %v779 = vadd.f32 %v715, %v716
  %v780 = vadd.f32 %v779, %v717
  %v781 = vadd.f32 %v780, %v718
  %v782 = vadd.f32 %v781, %v719
  %v783 = vadd.f32 %v782, %v720
  %v784 = vadd.f32 %v783, %v721
  %v785 = vadd.f32 %v784, %v722
  %v786 = vadd.f32 %v785, %v723
  %v787 = vadd.f32 %v786, %v724
  %v788 = vadd.f32 %v787, %v725
  %v789 = vadd.f32 %v788, %v726
  %v790 = vadd.f32 %v789, %v727
  %v791 = vadd.f32 %v790, %v728
  %v792 = vadd.f32 %v791, %v729
  %v793 = vadd.f32 %v792, %v730
  %v794 = vadd.f32 %v793, %v731
  %v795 = vadd.f32 %v794, %v732
  %v796 = vadd.f32 %v795, %v733
  %v797 = vadd.f32 %v796, %v734
  %v798 = vadd.f32 %v797, %v735
  %v799 = vadd.f32 %v798, %v736
  %v800 = vadd.f32 %v799, %v737
  %v801 = vadd.f32 %v800, %v738
  %v802 = vadd.f32 %v801, %v739
  %v803 = vadd.f32 %v802, %v740
  %v804 = vadd.f32 %v803, %v741
  %v805 = vadd.f32 %v804, %v742
  %v806 = vadd.f32 %v805, %v743
  %v807 = vadd.f32 %v806, %v744
  %v808 = vadd.f32 %v807, %v745
  %v809 = vadd.f32 %v808, %v746
  %v810 = vadd.f32 %v809, %v747
  %v811 = vadd.f32 %v810, %v748
  %v812 = vadd.f32 %v811, %v749
  %v813 = vadd.f32 %v812, %v750
  %v814 = vadd.f32 %v813, %v751
  %v815 = vadd.f32 %v814, %v752
  %v816 = vadd.f32 %v815, %v753
  %v817 = vadd.f32 %v816, %v754
  %v818 = vadd.f32 %v817, %v755
  %v819 = vadd.f32 %v818, %v756
  %v820 = vadd.f32 %v819, %v757
  %v821 = vadd.f32 %v820, %v758
  %v822 = vadd.f32 %v821, %v759
  %v823 = vadd.f32 %v822, %v760
  %v824 = vadd.f32 %v823, %v761
  %v825 = vadd.f32 %v824, %v762
  %v826 = vadd.f32 %v825, %v763
  %v827 = vadd.f32 %v826, %v764
  %v828 = vadd.f32 %v827, %v765
  %v829 = vadd.f32 %v828, %v766
  %v830 = vadd.f32 %v829, %v767
  %v831 = vadd.f32 %v830, %v768
  %v832 = vadd.f32 %v831, %v769
  %v833 = vadd.f32 %v832, %v770
  %v834 = vadd.f32 %v833, %v771
  %v835 = vadd.f32 %v834, %v772
  %v836 = vadd.f32 %v835, %v773
  %v837 = vadd.f32 %v836, %v774
  %v838 = vadd.f32 %v837, %v775
  %v839 = vadd.f32 %v838, %v776
  %v840 = vadd.f32 %v839, %v777
  %v841 = vadd.f32 %v840, %v778
  %v842 = vrot.slane %v841, 4
  %v843 = vadd.f32 %v841, %v842
  %v844 = vrot.slane %v843, 2
  %v845 = vadd.f32 %v843, %v844
  %v846 = vrot.slane %v845, 1
  %v847 = vadd.f32 %v845, %v846
  %vm848 = vcmask 1040384
  %v849 = vsel %vm848, %v714, %v847
  %vm850 = vcmask 1041408
  %v851 = vsel %vm850, %v849, 0.0
  %852 = vst [vmem:[%s2] sm:$0xff] %v851
  // Predicated region
  $region10: #{conv2d_relu_forward_nhwc.2} parent=0 // pred_check
    _
  $region11: #{conv2d_relu_forward_nhwc.2} parent=0 // pred_check_branch
    %854 = sbr.rel (0) target = $region13
  $region12: #{conv2d_relu_forward_nhwc.2} parent=0 // pred_region
    _
  $region13: #{conv2d_relu_forward_nhwc.2} parent=0 // pred_fallthru
    _
  // Predicated region
  $region14: #{conv2d_relu_forward_nhwc.2} parent=0 // pred_check
    _
  $region15: #{conv2d_relu_forward_nhwc.2} parent=0 // pred_check_branch
    %856 = sbr.rel (0) target = $region17
  $region16: #{conv2d_relu_forward_nhwc.2} parent=0 // pred_region
    _
  $region17: #{conv2d_relu_forward_nhwc.2} parent=0 // pred_fallthru
    _

</llo_original>
